<compile_context>
chip_gen: v7x
topology: tpu7x:2x2x1
jax: 0.10.0
libtpu: 0.0.40
codegen_flags: <defaults>
</compile_context>

<pallas_src>
import functools

import jax
import jax.numpy as jnp
from jax.experimental import pallas as pl
from jax.experimental.pallas import tpu as pltpu

_MASK_VAL = -1e30  # large-negative mask (avoids -inf - -inf = NaN paths)


def _gat_kernel(h_src_ref, h_dst_ref, w_ref, ss_ref, sd_ref, adj_ref,
                out_ref, m_sc, l_sc,
                *, num_heads, out_dim, negative_slope, use_residual):
    # h_src_ref : [Ts, in_dim]       bf16  (src-node features, tile s)
    # h_dst_ref : [Td, in_dim]       bf16  (dst-node features, tile d; residual)
    # w_ref     : [in_dim, Npad]     bf16  (all heads' fc weights, lane-padded)
    # ss_ref    : [H, Ts]            f32   (folded src attention logits)
    # sd_ref    : [Td, H]            f32   (folded dst attention logits)
    # adj_ref   : [Td, Ts]           int8  (1 where edge u -> v exists)
    # out_ref   : [Td, Npad]         f32   (resident accumulator across src axis)
    # m_sc/l_sc : [Td, H]            f32   (online-softmax running state)
    s = pl.program_id(1)
    n_s = pl.num_programs(1)
    d = out_dim
    hd_cols = num_heads * d

    @pl.when(s == 0)
    def _init():
        m_sc[...] = jnp.full_like(m_sc, _MASK_VAL)
        l_sc[...] = jnp.zeros_like(l_sc)
        out_ref[...] = jnp.zeros_like(out_ref)

    # One MXU pass projects the src tile for every head; keep the result bf16
    # so the per-head p @ z matmuls below run as bf16 x bf16 (f32 accumulate).
    z_bf = jnp.dot(h_src_ref[...], w_ref[...],
                   preferred_element_type=jnp.float32).astype(jnp.bfloat16)

    ss = ss_ref[...]                                     # [H, Ts]
    sd = sd_ref[...]                                     # [Td, H]
    # Edge mask built once per src step for all heads: 0 on edges, -1e30 off.
    mask_add = (adj_ref[...].astype(jnp.float32) - 1.0) * (-_MASK_VAL)

    m_prev_all = m_sc[...]                               # [Td, H]
    l_prev_all = l_sc[...]                               # [Td, H]
    acc_old = out_ref[...]                               # [Td, Npad] unnormalized

    head_cols, m_cols, l_cols = [], [], []
    for h in range(num_heads):
        # e[v,u] = leaky_relu(src_logit[u] + dst_logit[v]) masked to real edges
        e = sd[:, h:h + 1] + ss[h:h + 1, :]                              # [Td, Ts]
        e = jnp.maximum(e, negative_slope * e) + mask_add

        m_prev = m_prev_all[:, h:h + 1]
        m_new = jnp.maximum(m_prev, jnp.max(e, axis=1, keepdims=True))
        scale = jnp.exp(m_prev - m_new)                                  # [Td, 1]
        p = jnp.exp(e - m_new)                                           # [Td, Ts]
        l_new = scale * l_prev_all[:, h:h + 1] + jnp.sum(p, axis=1, keepdims=True)

        pz = jnp.dot(p.astype(jnp.bfloat16), z_bf[:, h * d:(h + 1) * d],
                     preferred_element_type=jnp.float32)                 # [Td, D]
        head_cols.append(scale * acc_old[:, h * d:(h + 1) * d] + pz)
        m_cols.append(m_new)
        l_cols.append(l_new)

    # Single dense stores for the online-softmax state.
    m_sc[...] = jnp.concatenate(m_cols, axis=1)
    l_all = jnp.concatenate(l_cols, axis=1)                              # [Td, H]
    l_sc[...] = l_all

    # Zero-padded lane tail keeps the accumulator / final stores full-width.
    tail = [acc_old[:, hd_cols:]] if acc_old.shape[1] > hd_cols else []

    @pl.when(s < n_s - 1)
    def _carry():
        out_ref[...] = jnp.concatenate(head_cols + tail, axis=1)

    @pl.when(s == n_s - 1)
    def _finalize():
        inv_l = pl.reciprocal(l_all, approx=True)                        # [Td, H]
        if use_residual:
            zd = jnp.dot(h_dst_ref[...], w_ref[...],
                         preferred_element_type=jnp.float32)             # [Td, Npad]
        res_cols = []
        for h in range(num_heads):
            r = head_cols[h] * inv_l[:, h:h + 1]
            if use_residual:
                r = r + zd[:, h * d:(h + 1) * d]
            res_cols.append(r)
        out_ref[...] = jnp.concatenate(res_cols + tail, axis=1)


def _round_up(x, m):
    return ((x + m - 1) // m) * m


def _choose_tiles(n_dst, n_src, td, ts):
    if ts is None:
        # Large src tiles amortize W/logit residency and per-step overhead.
        ts = min(1024, _round_up(n_src, 128))
    if td is None:
        td = min(256, _round_up(n_dst, 8))
        # Keep >= 2 dst tiles so the "parallel" dst axis can shard across both
        # TensorCores on v7x (no-op on single-TC v5e/v6e).
        if n_dst > 8 and _round_up(n_dst, td) // td < 2:
            td = max(8, _round_up((n_dst + 1) // 2, 8))
    return td, ts


def _vmem_limit_bytes():
    try:
        cap = int(pltpu.get_tpu_info().vmem_capacity_bytes)
    except Exception:  # conservative fallback if the query is unavailable
        cap = 64 * 1024 * 1024
    # 3/4 of physical leaves compiler-scratch headroom (48 MiB on v7x's 64 MiB),
    # capped at 64 MiB on the 128 MiB v5e/v6e parts.
    return min(cap * 3 // 4, 64 * 1024 * 1024)


def _prepare(h_src, w_fc, a_src, a_dst, dst_idx, adj, td, ts, out_pad):
    """Host-side prep: concat + lane-pad per-head fc weights, fold attn_fc
    through fc into per-node logits (computed once, f32), gather dst features,
    cast MXU operands to bf16, ship adjacency as int8, pad to tile multiples."""
    num_heads, in_dim, out_dim = w_fc.shape
    n_src = h_src.shape[0]
    n_dst = dst_idx.shape[0]
    n_src_p = _round_up(n_src, ts)
    n_dst_p = _round_up(n_dst, td)

    w_all = jnp.transpose(w_fc, (1, 0, 2)).reshape(in_dim, num_heads * out_dim)
    w_pad = jnp.zeros((in_dim, out_pad), jnp.float32).at[:, :num_heads * out_dim].set(w_all)

    # attn_fc folded through fc:  a_h . (W_h h) == (W_h^T a_h) . h
    a_src_fold = jnp.einsum('hio,ho->hi', w_fc, a_src)      # [H, in_dim]
    a_dst_fold = jnp.einsum('hio,ho->hi', w_fc, a_dst)      # [H, in_dim]

    h32 = h_src.astype(jnp.float32)
    hd32 = jnp.take(h32, dst_idx, axis=0)
    ss = a_src_fold @ h32.T                                  # [H, N_src]  f32
    sd = hd32 @ a_dst_fold.T                                 # [N_dst, H]  f32

    h_bf = h_src.astype(jnp.bfloat16)
    hd_bf = jnp.take(h_bf, dst_idx, axis=0)

    h_bf = jnp.pad(h_bf, ((0, n_src_p - n_src), (0, 0)))
    hd_bf = jnp.pad(hd_bf, ((0, n_dst_p - n_dst), (0, 0)))
    ss = jnp.pad(ss, ((0, 0), (0, n_src_p - n_src)))
    sd = jnp.pad(sd, ((0, n_dst_p - n_dst), (0, 0)))
    adj_i8 = jnp.pad(adj.astype(jnp.int8),
                     ((0, n_dst_p - n_dst), (0, n_src_p - n_src)))
    return (h_bf, hd_bf, w_pad.astype(jnp.bfloat16), ss, sd, adj_i8,
            n_dst_p, n_src_p)


def multi_head_gat(h_src, w_fc, a_src, a_dst, dst_idx, adj, *, merge="cat",
                   use_residual=False, negative_slope=0.01, td=None, ts=None):
    """h_src: [N_src,in_dim] f32; w_fc: [H,in_dim,out_dim] (fc.weight pre-transposed);
    a_src/a_dst: [H,out_dim] halves of attn_fc.weight; dst_idx: [N_dst] int32;
    adj: [N_dst,N_src] 0/1 block adjacency (edge u -> v at adj[v,u])."""
    num_heads, in_dim, out_dim = w_fc.shape
    n_src = int(h_src.shape[0])
    n_dst = int(dst_idx.shape[0])
    out_cols = num_heads * out_dim
    out_pad = _round_up(out_cols, 128)      # lane-dense accumulator / stores

    td, ts = _choose_tiles(n_dst, n_src, td, ts)
    (h_bf, hd_bf, w_pad, ss, sd, adj_i8, n_dst_p, n_src_p) = _prepare(
        h_src, w_fc, a_src, a_dst, dst_idx, adj, td, ts, out_pad)

    kern = functools.partial(_gat_kernel, num_heads=num_heads, out_dim=out_dim,
                             negative_slope=negative_slope,
                             use_residual=use_residual)

    out = pl.pallas_call(
        kern,
        out_shape=jax.ShapeDtypeStruct((n_dst_p, out_pad), jnp.float32),
        grid=(n_dst_p // td, n_src_p // ts),
        in_specs=[
            pl.BlockSpec((ts, in_dim), lambda d, s: (s, 0)),          # h_src tile
            pl.BlockSpec((td, in_dim), lambda d, s: (d, 0)),          # h_dst tile
            pl.BlockSpec((in_dim, out_pad), lambda d, s: (0, 0)),     # W (all heads)
            pl.BlockSpec((num_heads, ts), lambda d, s: (0, s)),       # src logits
            pl.BlockSpec((td, num_heads), lambda d, s: (d, 0)),       # dst logits
            pl.BlockSpec((td, ts), lambda d, s: (d, s)),              # adjacency int8
        ],
        out_specs=pl.BlockSpec((td, out_pad), lambda d, s: (d, 0)),
        scratch_shapes=[pltpu.VMEM((td, num_heads), jnp.float32),     # m state
                        pltpu.VMEM((td, num_heads), jnp.float32)],    # l state
        compiler_params=pltpu.CompilerParams(
            dimension_semantics=("parallel", "arbitrary"),
            vmem_limit_bytes=_vmem_limit_bytes()),
    )(h_bf, hd_bf, w_pad, ss, sd, adj_i8)

    out = out[:n_dst, :out_cols]
    if merge == "cat":
        return out  # [N_dst, H*out_dim] == torch.cat(head_outs, dim=1)
    # merge != 'cat': torch.mean(torch.stack(head_outs)) reduces to a scalar
    return jnp.mean(out)


def _reference(h_src, w_fc, a_src, a_dst, dst_idx, adj, *, use_residual,
               negative_slope=0.01):
    """Pure-JAX f32 reference mirroring the torch/DGL math per head."""
    num_heads = w_fc.shape[0]
    h = h_src.astype(jnp.float32)
    outs = []
    for hd in range(num_heads):
        z = h @ w_fc[hd]                          # [N_src, D]
        z_dst = z[dst_idx]                        # [N_dst, D]
        e = (z @ a_src[hd])[None, :] + (z_dst @ a_dst[hd])[:, None]
        e = jnp.where(e > 0, e, negative_slope * e)
        e = jnp.where(adj > 0, e, _MASK_VAL)
        e = e - jnp.max(e, axis=1, keepdims=True)
        p = jnp.exp(e)
        alpha = p / jnp.sum(p, axis=1, keepdims=True)
        o = alpha @ z
        if use_residual:
            o = o + z_dst
        outs.append(o)
    return jnp.concatenate(outs, axis=1)


if __name__ == "__main__":
    num_heads, in_dim, out_dim = 4, 16, 16
    n_src, n_dst = 256, 128

    key = jax.random.PRNGKey(0)
    k_fc, k_at, k_h, k_adj = jax.random.split(key, 4)

    # xavier_normal_ with gain = calculate_gain('relu') = sqrt(2)
    gain = 2.0 ** 0.5
    std_fc = gain * (2.0 / (in_dim + out_dim)) ** 0.5
    std_at = gain * (2.0 / (2 * out_dim + 1)) ** 0.5

    # fc.weight is (out_dim, in_dim) in torch; stored pre-transposed: z = h @ W^T
    w_fc = (std_fc * jax.random.normal(k_fc, (num_heads, in_dim, out_dim))).astype(jnp.float32)
    attn = (std_at * jax.random.normal(k_at, (num_heads, 2 * out_dim))).astype(jnp.float32)
    a_src = attn[:, :out_dim]    # multiplies edges.src['z']
    a_dst = attn[:, out_dim:]    # multiplies edges.dst['z']

    h_src = jax.random.normal(k_h, (n_src, in_dim), jnp.float32)

    # dst layer nodes are a subset of src layer nodes (topk index-matching in forward)
    dst_idx = (2 * jnp.arange(n_dst)).astype(jnp.int32)
    adj = (jax.random.uniform(k_adj, (n_dst, n_src)) < 0.15).astype(jnp.float32)
    adj = adj.at[jnp.arange(n_dst), dst_idx].set(1.0)   # every dst node has an in-edge

    # ts=128 -> 2 src steps (exercises the online-softmax carry); td auto-picks
    # 64 so the dst "parallel" axis has 2 tiles.
    out = multi_head_gat(h_src, w_fc, a_src, a_dst, dst_idx, adj,
                         merge="cat", use_residual=False, ts=128)
    out = jax.block_until_ready(out)
    ref = _reference(h_src, w_fc, a_src, a_dst, dst_idx, adj, use_residual=False)
    assert out.shape == (n_dst, num_heads * out_dim)
    assert jnp.allclose(out, ref, atol=1e-1, rtol=1e-1), \
        float(jnp.max(jnp.abs(out - ref)))

    out_r = multi_head_gat(h_src, w_fc, a_src, a_dst, dst_idx, adj,
                           merge="cat", use_residual=True, ts=128)
    out_r = jax.block_until_ready(out_r)
    ref_r = _reference(h_src, w_fc, a_src, a_dst, dst_idx, adj, use_residual=True)
    assert jnp.allclose(out_r, ref_r, atol=1e-1, rtol=1e-1), \
        float(jnp.max(jnp.abs(out_r - ref_r)))

    print("KERNEL_OK")
</pallas_src>

<mosaic_0001>
module attributes {stable_mosaic.version = 11 : i64} {
  func.func @_gat_kernel(%arg0: i32, %arg1: i32, %arg2: memref<128x16xbf16, #tpu.memory_space<vmem>>, %arg3: memref<64x16xbf16, #tpu.memory_space<vmem>>, %arg4: memref<16x128xbf16, #tpu.memory_space<vmem>>, %arg5: memref<4x128xf32, #tpu.memory_space<vmem>>, %arg6: memref<64x4xf32, #tpu.memory_space<vmem>>, %arg7: memref<64x128xi8, #tpu.memory_space<vmem>>, %arg8: memref<64x128xf32, #tpu.memory_space<vmem>>, %arg9: memref<64x4xf32, #tpu.memory_space<vmem>>, %arg10: memref<64x4xf32, #tpu.memory_space<vmem>>) attributes {dimension_semantics = [#tpu.dimension_semantics<parallel>, #tpu.dimension_semantics<arbitrary>], iteration_bounds = array<i64: 2, 2>, scalar_prefetch = 0 : i64, scratch_operands = 2 : i64, tpu.core_type = #tpu.core_type<tc>, window_params = [{transform_indices = @transform_0, window_bounds = array<i64: 128, 16>}, {transform_indices = @transform_1, window_bounds = array<i64: 64, 16>}, {pipeline_mode = #tpu.pipeline_mode<synchronous>, transform_indices = @transform_2, window_bounds = array<i64: 16, 128>}, {transform_indices = @transform_3, window_bounds = array<i64: 4, 128>}, {transform_indices = @transform_4, window_bounds = array<i64: 64, 4>}, {transform_indices = @transform_5, window_bounds = array<i64: 64, 128>}, {transform_indices = @transform_6, window_bounds = array<i64: 64, 128>}]} {
    %c0_i32 = arith.constant 0 : i32
    %0 = arith.cmpi eq, %arg1, %c0_i32 : i32
    %1 = arith.extui %0 : i1 to i32
    %c0_i32_0 = arith.constant 0 : i32
    %2 = arith.cmpi ne, %1, %c0_i32_0 : i32
    scf.if %2 {
      %cst_41 = arith.constant -1.000000e+30 : f32
      %149 = vector.broadcast %cst_41 : f32 to vector<64x4xf32>
      %c0_42 = arith.constant 0 : index
      %c0_43 = arith.constant 0 : index
      %150 = vector.load %arg9[%c0_42, %c0_43] : memref<64x4xf32, #tpu.memory_space<vmem>>, vector<64x4xf32>
      tpu.vector_store %arg9[%c0_42, %c0_43], %149 {strides = array<i32>} : memref<64x4xf32, #tpu.memory_space<vmem>>, vector<64x4xf32>,
      %cst_44 = arith.constant 0.000000e+00 : f32
      %151 = vector.broadcast %cst_44 : f32 to vector<64x4xf32>
      %c0_45 = arith.constant 0 : index
      %c0_46 = arith.constant 0 : index
      %152 = vector.load %arg10[%c0_45, %c0_46] : memref<64x4xf32, #tpu.memory_space<vmem>>, vector<64x4xf32>
      tpu.vector_store %arg10[%c0_45, %c0_46], %151 {strides = array<i32>} : memref<64x4xf32, #tpu.memory_space<vmem>>, vector<64x4xf32>,
      %cst_47 = arith.constant 0.000000e+00 : f32
      %153 = vector.broadcast %cst_47 : f32 to vector<64x128xf32>
      %c0_48 = arith.constant 0 : index
      %c0_49 = arith.constant 0 : index
      %154 = vector.load %arg8[%c0_48, %c0_49] : memref<64x128xf32, #tpu.memory_space<vmem>>, vector<64x128xf32>
      tpu.vector_store %arg8[%c0_48, %c0_49], %153 {strides = array<i32>} : memref<64x128xf32, #tpu.memory_space<vmem>>, vector<64x128xf32>,
    } else {
    }
    %c0 = arith.constant 0 : index
    %c0_1 = arith.constant 0 : index
    %3 = vector.load %arg2[%c0, %c0_1] : memref<128x16xbf16, #tpu.memory_space<vmem>>, vector<128x16xbf16>
    %c0_2 = arith.constant 0 : index
    %c0_3 = arith.constant 0 : index
    %4 = vector.load %arg4[%c0_2, %c0_3] : memref<16x128xbf16, #tpu.memory_space<vmem>>, vector<16x128xbf16>
    %cst = arith.constant dense<0.000000e+00> : vector<128x128xf32>
    %5 = tpu.matmul %3, %4, %cst {dimension_numbers = #tpu.dot_dimension_numbers<[1], [0], [0], [1], [0, 0, 1, 1], [], []>} : vector<128x16xbf16>, vector<16x128xbf16>, vector<128x128xf32> -> vector<128x128xf32>
    %6 = arith.truncf %5 : vector<128x128xf32> to vector<128x128xbf16>
    %c0_4 = arith.constant 0 : index
    %c0_5 = arith.constant 0 : index
    %7 = vector.load %arg5[%c0_4, %c0_5] : memref<4x128xf32, #tpu.memory_space<vmem>>, vector<4x128xf32>
    %c0_6 = arith.constant 0 : index
    %c0_7 = arith.constant 0 : index
    %8 = vector.load %arg6[%c0_6, %c0_7] : memref<64x4xf32, #tpu.memory_space<vmem>>, vector<64x4xf32>
    %c0_8 = arith.constant 0 : index
    %c0_9 = arith.constant 0 : index
    %9 = vector.load %arg7[%c0_8, %c0_9] : memref<64x128xi8, #tpu.memory_space<vmem>>, vector<64x128xi8>
    %10 = arith.sitofp %9 : vector<64x128xi8> to vector<64x128xf32>
    %cst_10 = arith.constant 1.000000e+00 : f32
    %11 = vector.broadcast %cst_10 : f32 to vector<64x128xf32>
    %12 = arith.subf %10, %11 : vector<64x128xf32>
    %cst_11 = arith.constant 1.000000e+30 : f32
    %13 = vector.broadcast %cst_11 : f32 to vector<64x128xf32>
    %14 = arith.mulf %12, %13 : vector<64x128xf32>
    %c0_12 = arith.constant 0 : index
    %c0_13 = arith.constant 0 : index
    %15 = vector.load %arg9[%c0_12, %c0_13] : memref<64x4xf32, #tpu.memory_space<vmem>>, vector<64x4xf32>
    %c0_14 = arith.constant 0 : index
    %c0_15 = arith.constant 0 : index
    %16 = vector.load %arg10[%c0_14, %c0_15] : memref<64x4xf32, #tpu.memory_space<vmem>>, vector<64x4xf32>
    %c0_16 = arith.constant 0 : index
    %c0_17 = arith.constant 0 : index
    %17 = vector.load %arg8[%c0_16, %c0_17] : memref<64x128xf32, #tpu.memory_space<vmem>>, vector<64x128xf32>
    %18 = vector.extract_strided_slice %8 {offsets = [0, 0], sizes = [64, 1], strides = [1, 1]} : vector<64x4xf32> to vector<64x1xf32>
    %19 = vector.extract_strided_slice %7 {offsets = [0, 0], sizes = [1, 128], strides = [1, 1]} : vector<4x128xf32> to vector<1x128xf32>
    %20 = vector.broadcast %18 : vector<64x1xf32> to vector<64x128xf32>
    %21 = vector.broadcast %19 : vector<1x128xf32> to vector<64x128xf32>
    %22 = arith.addf %20, %21 : vector<64x128xf32>
    %cst_18 = arith.constant 0.00999999977 : f32
    %23 = vector.broadcast %cst_18 : f32 to vector<64x128xf32>
    %24 = arith.mulf %23, %22 : vector<64x128xf32>
    %25 = arith.maximumf %22, %24 : vector<64x128xf32>
    %26 = arith.addf %25, %14 : vector<64x128xf32>
    %27 = vector.extract_strided_slice %15 {offsets = [0, 0], sizes = [64, 1], strides = [1, 1]} : vector<64x4xf32> to vector<64x1xf32>
    %cst_19 = arith.constant dense<0xFF800000> : vector<64xf32>
    %28 = vector.multi_reduction <maximumf>, %26, %cst_19 [1] : vector<64x128xf32> to vector<64xf32>
    %29 = vector.shape_cast %28 : vector<64xf32> to vector<64x1xf32>
    %30 = arith.maximumf %27, %29 : vector<64x1xf32>
    %31 = arith.subf %27, %30 : vector<64x1xf32>
    %32 = math.exp %31 : vector<64x1xf32>
    %33 = vector.broadcast %30 : vector<64x1xf32> to vector<64x128xf32>
    %34 = arith.subf %26, %33 : vector<64x128xf32>
    %35 = math.exp %34 : vector<64x128xf32>
    %36 = vector.extract_strided_slice %16 {offsets = [0, 0], sizes = [64, 1], strides = [1, 1]} : vector<64x4xf32> to vector<64x1xf32>
    %37 = arith.mulf %32, %36 : vector<64x1xf32>
    %cst_20 = arith.constant dense<0.000000e+00> : vector<64xf32>
    %38 = vector.multi_reduction <add>, %35, %cst_20 [1] : vector<64x128xf32> to vector<64xf32>
    %39 = vector.shape_cast %38 : vector<64xf32> to vector<64x1xf32>
    %40 = arith.addf %37, %39 : vector<64x1xf32>
    %41 = arith.truncf %35 : vector<64x128xf32> to vector<64x128xbf16>
    %42 = vector.extract_strided_slice %6 {offsets = [0, 0], sizes = [128, 16], strides = [1, 1]} : vector<128x128xbf16> to vector<128x16xbf16>
    %cst_21 = arith.constant dense<0.000000e+00> : vector<64x16xf32>
    %43 = tpu.matmul %41, %42, %cst_21 {dimension_numbers = #tpu.dot_dimension_numbers<[1], [0], [0], [1], [0, 0, 1, 1], [], []>} : vector<64x128xbf16>, vector<128x16xbf16>, vector<64x16xf32> -> vector<64x16xf32>
    %44 = vector.extract_strided_slice %17 {offsets = [0, 0], sizes = [64, 16], strides = [1, 1]} : vector<64x128xf32> to vector<64x16xf32>
    %45 = vector.broadcast %32 : vector<64x1xf32> to vector<64x16xf32>
    %46 = arith.mulf %45, %44 : vector<64x16xf32>
    %47 = arith.addf %46, %43 : vector<64x16xf32>
    %48 = vector.extract_strided_slice %8 {offsets = [0, 1], sizes = [64, 1], strides = [1, 1]} : vector<64x4xf32> to vector<64x1xf32>
    %49 = vector.extract_strided_slice %7 {offsets = [1, 0], sizes = [1, 128], strides = [1, 1]} : vector<4x128xf32> to vector<1x128xf32>
    %50 = vector.broadcast %48 : vector<64x1xf32> to vector<64x128xf32>
    %51 = vector.broadcast %49 : vector<1x128xf32> to vector<64x128xf32>
    %52 = arith.addf %50, %51 : vector<64x128xf32>
    %cst_22 = arith.constant 0.00999999977 : f32
    %53 = vector.broadcast %cst_22 : f32 to vector<64x128xf32>
    %54 = arith.mulf %53, %52 : vector<64x128xf32>
    %55 = arith.maximumf %52, %54 : vector<64x128xf32>
    %56 = arith.addf %55, %14 : vector<64x128xf32>
    %57 = vector.extract_strided_slice %15 {offsets = [0, 1], sizes = [64, 1], strides = [1, 1]} : vector<64x4xf32> to vector<64x1xf32>
    %cst_23 = arith.constant dense<0xFF800000> : vector<64xf32>
    %58 = vector.multi_reduction <maximumf>, %56, %cst_23 [1] : vector<64x128xf32> to vector<64xf32>
    %59 = vector.shape_cast %58 : vector<64xf32> to vector<64x1xf32>
    %60 = arith.maximumf %57, %59 : vector<64x1xf32>
    %61 = arith.subf %57, %60 : vector<64x1xf32>
    %62 = math.exp %61 : vector<64x1xf32>
    %63 = vector.broadcast %60 : vector<64x1xf32> to vector<64x128xf32>
    %64 = arith.subf %56, %63 : vector<64x128xf32>
    %65 = math.exp %64 : vector<64x128xf32>
    %66 = vector.extract_strided_slice %16 {offsets = [0, 1], sizes = [64, 1], strides = [1, 1]} : vector<64x4xf32> to vector<64x1xf32>
    %67 = arith.mulf %62, %66 : vector<64x1xf32>
    %cst_24 = arith.constant dense<0.000000e+00> : vector<64xf32>
    %68 = vector.multi_reduction <add>, %65, %cst_24 [1] : vector<64x128xf32> to vector<64xf32>
    %69 = vector.shape_cast %68 : vector<64xf32> to vector<64x1xf32>
    %70 = arith.addf %67, %69 : vector<64x1xf32>
    %71 = arith.truncf %65 : vector<64x128xf32> to vector<64x128xbf16>
    %72 = vector.extract_strided_slice %6 {offsets = [0, 16], sizes = [128, 16], strides = [1, 1]} : vector<128x128xbf16> to vector<128x16xbf16>
    %cst_25 = arith.constant dense<0.000000e+00> : vector<64x16xf32>
    %73 = tpu.matmul %71, %72, %cst_25 {dimension_numbers = #tpu.dot_dimension_numbers<[1], [0], [0], [1], [0, 0, 1, 1], [], []>} : vector<64x128xbf16>, vector<128x16xbf16>, vector<64x16xf32> -> vector<64x16xf32>
    %74 = vector.extract_strided_slice %17 {offsets = [0, 16], sizes = [64, 16], strides = [1, 1]} : vector<64x128xf32> to vector<64x16xf32>
    %75 = vector.broadcast %62 : vector<64x1xf32> to vector<64x16xf32>
    %76 = arith.mulf %75, %74 : vector<64x16xf32>
    %77 = arith.addf %76, %73 : vector<64x16xf32>
    %78 = vector.extract_strided_slice %8 {offsets = [0, 2], sizes = [64, 1], strides = [1, 1]} : vector<64x4xf32> to vector<64x1xf32>
    %79 = vector.extract_strided_slice %7 {offsets = [2, 0], sizes = [1, 128], strides = [1, 1]} : vector<4x128xf32> to vector<1x128xf32>
    %80 = vector.broadcast %78 : vector<64x1xf32> to vector<64x128xf32>
    %81 = vector.broadcast %79 : vector<1x128xf32> to vector<64x128xf32>
    %82 = arith.addf %80, %81 : vector<64x128xf32>
    %cst_26 = arith.constant 0.00999999977 : f32
    %83 = vector.broadcast %cst_26 : f32 to vector<64x128xf32>
    %84 = arith.mulf %83, %82 : vector<64x128xf32>
    %85 = arith.maximumf %82, %84 : vector<64x128xf32>
    %86 = arith.addf %85, %14 : vector<64x128xf32>
    %87 = vector.extract_strided_slice %15 {offsets = [0, 2], sizes = [64, 1], strides = [1, 1]} : vector<64x4xf32> to vector<64x1xf32>
    %cst_27 = arith.constant dense<0xFF800000> : vector<64xf32>
    %88 = vector.multi_reduction <maximumf>, %86, %cst_27 [1] : vector<64x128xf32> to vector<64xf32>
    %89 = vector.shape_cast %88 : vector<64xf32> to vector<64x1xf32>
    %90 = arith.maximumf %87, %89 : vector<64x1xf32>
    %91 = arith.subf %87, %90 : vector<64x1xf32>
    %92 = math.exp %91 : vector<64x1xf32>
    %93 = vector.broadcast %90 : vector<64x1xf32> to vector<64x128xf32>
    %94 = arith.subf %86, %93 : vector<64x128xf32>
    %95 = math.exp %94 : vector<64x128xf32>
    %96 = vector.extract_strided_slice %16 {offsets = [0, 2], sizes = [64, 1], strides = [1, 1]} : vector<64x4xf32> to vector<64x1xf32>
    %97 = arith.mulf %92, %96 : vector<64x1xf32>
    %cst_28 = arith.constant dense<0.000000e+00> : vector<64xf32>
    %98 = vector.multi_reduction <add>, %95, %cst_28 [1] : vector<64x128xf32> to vector<64xf32>
    %99 = vector.shape_cast %98 : vector<64xf32> to vector<64x1xf32>
    %100 = arith.addf %97, %99 : vector<64x1xf32>
    %101 = arith.truncf %95 : vector<64x128xf32> to vector<64x128xbf16>
    %102 = vector.extract_strided_slice %6 {offsets = [0, 32], sizes = [128, 16], strides = [1, 1]} : vector<128x128xbf16> to vector<128x16xbf16>
    %cst_29 = arith.constant dense<0.000000e+00> : vector<64x16xf32>
    %103 = tpu.matmul %101, %102, %cst_29 {dimension_numbers = #tpu.dot_dimension_numbers<[1], [0], [0], [1], [0, 0, 1, 1], [], []>} : vector<64x128xbf16>, vector<128x16xbf16>, vector<64x16xf32> -> vector<64x16xf32>
    %104 = vector.extract_strided_slice %17 {offsets = [0, 32], sizes = [64, 16], strides = [1, 1]} : vector<64x128xf32> to vector<64x16xf32>
    %105 = vector.broadcast %92 : vector<64x1xf32> to vector<64x16xf32>
    %106 = arith.mulf %105, %104 : vector<64x16xf32>
    %107 = arith.addf %106, %103 : vector<64x16xf32>
    %108 = vector.extract_strided_slice %8 {offsets = [0, 3], sizes = [64, 1], strides = [1, 1]} : vector<64x4xf32> to vector<64x1xf32>
    %109 = vector.extract_strided_slice %7 {offsets = [3, 0], sizes = [1, 128], strides = [1, 1]} : vector<4x128xf32> to vector<1x128xf32>
    %110 = vector.broadcast %108 : vector<64x1xf32> to vector<64x128xf32>
    %111 = vector.broadcast %109 : vector<1x128xf32> to vector<64x128xf32>
    %112 = arith.addf %110, %111 : vector<64x128xf32>
    %cst_30 = arith.constant 0.00999999977 : f32
    %113 = vector.broadcast %cst_30 : f32 to vector<64x128xf32>
    %114 = arith.mulf %113, %112 : vector<64x128xf32>
    %115 = arith.maximumf %112, %114 : vector<64x128xf32>
    %116 = arith.addf %115, %14 : vector<64x128xf32>
    %117 = vector.extract_strided_slice %15 {offsets = [0, 3], sizes = [64, 1], strides = [1, 1]} : vector<64x4xf32> to vector<64x1xf32>
    %cst_31 = arith.constant dense<0xFF800000> : vector<64xf32>
    %118 = vector.multi_reduction <maximumf>, %116, %cst_31 [1] : vector<64x128xf32> to vector<64xf32>
    %119 = vector.shape_cast %118 : vector<64xf32> to vector<64x1xf32>
    %120 = arith.maximumf %117, %119 : vector<64x1xf32>
    %121 = arith.subf %117, %120 : vector<64x1xf32>
    %122 = math.exp %121 : vector<64x1xf32>
    %123 = vector.broadcast %120 : vector<64x1xf32> to vector<64x128xf32>
    %124 = arith.subf %116, %123 : vector<64x128xf32>
    %125 = math.exp %124 : vector<64x128xf32>
    %126 = vector.extract_strided_slice %16 {offsets = [0, 3], sizes = [64, 1], strides = [1, 1]} : vector<64x4xf32> to vector<64x1xf32>
    %127 = arith.mulf %122, %126 : vector<64x1xf32>
    %cst_32 = arith.constant dense<0.000000e+00> : vector<64xf32>
    %128 = vector.multi_reduction <add>, %125, %cst_32 [1] : vector<64x128xf32> to vector<64xf32>
    %129 = vector.shape_cast %128 : vector<64xf32> to vector<64x1xf32>
    %130 = arith.addf %127, %129 : vector<64x1xf32>
    %131 = arith.truncf %125 : vector<64x128xf32> to vector<64x128xbf16>
    %132 = vector.extract_strided_slice %6 {offsets = [0, 48], sizes = [128, 16], strides = [1, 1]} : vector<128x128xbf16> to vector<128x16xbf16>
    %cst_33 = arith.constant dense<0.000000e+00> : vector<64x16xf32>
    %133 = tpu.matmul %131, %132, %cst_33 {dimension_numbers = #tpu.dot_dimension_numbers<[1], [0], [0], [1], [0, 0, 1, 1], [], []>} : vector<64x128xbf16>, vector<128x16xbf16>, vector<64x16xf32> -> vector<64x16xf32>
    %134 = vector.extract_strided_slice %17 {offsets = [0, 48], sizes = [64, 16], strides = [1, 1]} : vector<64x128xf32> to vector<64x16xf32>
    %135 = vector.broadcast %122 : vector<64x1xf32> to vector<64x16xf32>
    %136 = arith.mulf %135, %134 : vector<64x16xf32>
    %137 = arith.addf %136, %133 : vector<64x16xf32>
    %138 = tpu.concatenate %30, %60, %90, %120 in 1 : vector<64x1xf32>, vector<64x1xf32>, vector<64x1xf32>, vector<64x1xf32> -> vector<64x4xf32>
    %c0_34 = arith.constant 0 : index
    %c0_35 = arith.constant 0 : index
    %139 = vector.load %arg9[%c0_34, %c0_35] : memref<64x4xf32, #tpu.memory_space<vmem>>, vector<64x4xf32>
    tpu.vector_store %arg9[%c0_34, %c0_35], %138 {strides = array<i32>} : memref<64x4xf32, #tpu.memory_space<vmem>>, vector<64x4xf32>,
    %140 = tpu.concatenate %40, %70, %100, %130 in 1 : vector<64x1xf32>, vector<64x1xf32>, vector<64x1xf32>, vector<64x1xf32> -> vector<64x4xf32>
    %c0_36 = arith.constant 0 : index
    %c0_37 = arith.constant 0 : index
    %141 = vector.load %arg10[%c0_36, %c0_37] : memref<64x4xf32, #tpu.memory_space<vmem>>, vector<64x4xf32>
    tpu.vector_store %arg10[%c0_36, %c0_37], %140 {strides = array<i32>} : memref<64x4xf32, #tpu.memory_space<vmem>>, vector<64x4xf32>,
    %142 = vector.extract_strided_slice %17 {offsets = [0, 64], sizes = [64, 64], strides = [1, 1]} : vector<64x128xf32> to vector<64x64xf32>
    %c1_i32 = arith.constant 1 : i32
    %143 = arith.cmpi slt, %arg1, %c1_i32 : i32
    %144 = arith.extui %143 : i1 to i32
    %c0_i32_38 = arith.constant 0 : i32
    %145 = arith.cmpi ne, %144, %c0_i32_38 : i32
    scf.if %145 {
      %149 = tpu.concatenate %47, %77, %107, %137, %142 in 1 : vector<64x16xf32>, vector<64x16xf32>, vector<64x16xf32>, vector<64x16xf32>, vector<64x64xf32> -> vector<64x128xf32>
      %c0_41 = arith.constant 0 : index
      %c0_42 = arith.constant 0 : index
      %150 = vector.load %arg8[%c0_41, %c0_42] : memref<64x128xf32, #tpu.memory_space<vmem>>, vector<64x128xf32>
      tpu.vector_store %arg8[%c0_41, %c0_42], %149 {strides = array<i32>} : memref<64x128xf32, #tpu.memory_space<vmem>>, vector<64x128xf32>,
    } else {
    }
    %c1_i32_39 = arith.constant 1 : i32
    %146 = arith.cmpi eq, %arg1, %c1_i32_39 : i32
    %147 = arith.extui %146 : i1 to i32
    %c0_i32_40 = arith.constant 0 : i32
    %148 = arith.cmpi ne, %147, %c0_i32_40 : i32
    scf.if %148 {
      %149 = tpu.reciprocal %140 {approx = true} : vector<64x4xf32> -> vector<64x4xf32>
      %150 = vector.extract_strided_slice %149 {offsets = [0, 0], sizes = [64, 1], strides = [1, 1]} : vector<64x4xf32> to vector<64x1xf32>
      %151 = vector.broadcast %150 : vector<64x1xf32> to vector<64x16xf32>
      %152 = arith.mulf %47, %151 : vector<64x16xf32>
      %153 = vector.extract_strided_slice %149 {offsets = [0, 1], sizes = [64, 1], strides = [1, 1]} : vector<64x4xf32> to vector<64x1xf32>
      %154 = vector.broadcast %153 : vector<64x1xf32> to vector<64x16xf32>
      %155 = arith.mulf %77, %154 : vector<64x16xf32>
      %156 = vector.extract_strided_slice %149 {offsets = [0, 2], sizes = [64, 1], strides = [1, 1]} : vector<64x4xf32> to vector<64x1xf32>
      %157 = vector.broadcast %156 : vector<64x1xf32> to vector<64x16xf32>
      %158 = arith.mulf %107, %157 : vector<64x16xf32>
      %159 = vector.extract_strided_slice %149 {offsets = [0, 3], sizes = [64, 1], strides = [1, 1]} : vector<64x4xf32> to vector<64x1xf32>
      %160 = vector.broadcast %159 : vector<64x1xf32> to vector<64x16xf32>
      %161 = arith.mulf %137, %160 : vector<64x16xf32>
      %162 = tpu.concatenate %152, %155, %158, %161, %142 in 1 : vector<64x16xf32>, vector<64x16xf32>, vector<64x16xf32>, vector<64x16xf32>, vector<64x64xf32> -> vector<64x128xf32>
      %c0_41 = arith.constant 0 : index
      %c0_42 = arith.constant 0 : index
      %163 = vector.load %arg8[%c0_41, %c0_42] : memref<64x128xf32, #tpu.memory_space<vmem>>, vector<64x128xf32>
      tpu.vector_store %arg8[%c0_41, %c0_42], %162 {strides = array<i32>} : memref<64x128xf32, #tpu.memory_space<vmem>>, vector<64x128xf32>,
    } else {
    }
    return
  }
  func.func @transform_0(%arg0: i32, %arg1: i32) -> (i32, i32) {
    %c0_i32 = arith.constant 0 : i32
    %c0_i32_0 = arith.constant 0 : i32
    return %arg1, %c0_i32 : i32, i32
  }
  func.func @transform_1(%arg0: i32, %arg1: i32) -> (i32, i32) {
    %c0_i32 = arith.constant 0 : i32
    %c0_i32_0 = arith.constant 0 : i32
    return %arg0, %c0_i32 : i32, i32
  }
  func.func @transform_2(%arg0: i32, %arg1: i32) -> (i32, i32) {
    %c0_i32 = arith.constant 0 : i32
    %c0_i32_0 = arith.constant 0 : i32
    %c0_i32_1 = arith.constant 0 : i32
    return %c0_i32, %c0_i32_0 : i32, i32
  }
  func.func @transform_3(%arg0: i32, %arg1: i32) -> (i32, i32) {
    %c0_i32 = arith.constant 0 : i32
    %c0_i32_0 = arith.constant 0 : i32
    return %c0_i32, %arg1 : i32, i32
  }
  func.func @transform_4(%arg0: i32, %arg1: i32) -> (i32, i32) {
    %c0_i32 = arith.constant 0 : i32
    %c0_i32_0 = arith.constant 0 : i32
    return %arg0, %c0_i32 : i32, i32
  }
  func.func @transform_5(%arg0: i32, %arg1: i32) -> (i32, i32) {
    %c0_i32 = arith.constant 0 : i32
    return %arg0, %arg1 : i32, i32
  }
  func.func @transform_6(%arg0: i32, %arg1: i32) -> (i32, i32) {
    %c0_i32 = arith.constant 0 : i32
    %c0_i32_0 = arith.constant 0 : i32
    return %arg0, %c0_i32 : i32, i32
  }
}

</mosaic_0001>

<llo_original>
// kernel: tpu_custom_call.1
$region0: #{tpu_custom_call.1}
  #allocation0 [shape = 'u32[]', space=smem, size = 0x4, offset = 0x4, fixed_abs, tag = 'smem constant byte address 0x4 - core index']
  #allocation1 [shape = 'u32[144,128]{1,0:T(1,128)}', space=vmem, size = 0x12000, scoped, tag = 'internal scratch']
  #allocation2 [shape = 'f32[64,4]{1,0:T(8,128)}', space=vmem, size = 0x8000, scoped, tag = 'scratch operand']
  #allocation3 [shape = 'f32[64,4]{1,0:T(8,128)}', space=vmem, size = 0x8000, scoped, tag = 'scratch operand']
  %s0 = inlined_call_operand.vmem [shape: bf16[256,16], index: 0, kind: input, shape index: {}]
  %s1 = inlined_call_operand.vmem [shape: bf16[128,16], index: 1, kind: input, shape index: {}]
  %s2 = inlined_call_operand.vmem [shape: bf16[16,128], index: 2, kind: input, shape index: {}]
  %s3 = inlined_call_operand.vmem [shape: f32[4,256], index: 3, kind: input, shape index: {}]
  %s4 = inlined_call_operand.vmem [shape: f32[128,4], index: 4, kind: input, shape index: {}]
  %s5 = inlined_call_operand.vmem [shape: s8[128,256], index: 5, kind: input, shape index: {}]
  %s6 = inlined_call_operand.hbm [shape: f32[128,128], index: 6, kind: output, shape index: {}]
  %s7 = sld [smem:[#allocation0]]
  $region107: #{tpu_custom_call.1} parent=0
    _
  %s9 = ssub.s32 1, %s7
  %s10 = scalar_select 0, %s9, %s7
  $region1: #{tpu_custom_call.1} parent=0
    #allocation4 [shape = 'u8[16384]{0}', space=vmem, size = 0x4000, scoped, tag = 'input window, operand 5']
    #allocation5 [shape = 'u8[65536]{0}', space=vmem, size = 0x10000, scoped, tag = 'output window, operand 0']
    #allocation6 [shape = 's32[2]{0}', space=sflag, size = 0x8, scoped, tag = 'scoped memory for tpu_custom_call.1']
    %11 = vsyncpa [#allocation6], 0
    %s12 = scalar_lea.sflag [#allocation6], 1
    %13 = vsyncpa %s12, 0
    loop: start=0, step=1, limit=6
    $region2: #{tpu_custom_call.1} parent=1 // loop_pre_header
      _
    $region3: #{tpu_custom_call.1} parent=1 // loop_header
      %s15 = sphi 0, %s19
      %p16 = scmp.ge.s32.totalorder %s15, 6
      %s22 = sphi 0, %s34
      %s23 = sphi 0, %s30
      %s24 = sphi 0, %s22
      %s25 = sphi 0, %s23
      %s26 = sphi 0, %s24
      %s27 = sphi 0, %s25
      %s37 = sphi 0, %s39
      %s40 = sphi 0, %s37
      %s41 = sphi 0, %s40
      %s57 = sphi 0, %s41
      %s63 = sphi 0, %s65
      %s66 = sphi 0, %s63
      %s67 = sphi 0, %s66
      %s83 = sphi 0, %s67
      %s87 = sphi 0, %s87
      %s89 = sphi 0, %s87
      %s90 = sphi 0, %s89
      %s104 = sphi 0, %s90
      %s110 = sphi 0, %s112
      %s113 = sphi 0, %s110
      %s114 = sphi 0, %s113
      %s130 = sphi 0, %s114
      %s136 = sphi 0, %s138
      %s139 = sphi 0, %s136
      %s140 = sphi 0, %s139
      %s156 = sphi 0, %s140
      %s164 = sphi 0, %s166
      %s167 = sphi 0, %s164
      %s168 = sphi 0, %s167
      %s184 = sphi 0, %s168
      %s190 = sphi 0, %s192
      %s193 = sphi 0, %s190
      %s194 = sphi 0, %s193
      %s210 = sphi 0, %s194
    $region4: #{tpu_custom_call.1} parent=1 // loop_header_branch
      %18 = sbr.rel (%p16) target = $region8
    $region5: #{tpu_custom_call.1} parent=1 // loop_body
      %s20 = ssub.s32 %s15, 1
      %s21 = ssub.s32 %s15, 2
      %s28 = sadd.s32 1, %s23
      %p29 = scmp.ge.s32.totalorder %s28, 2
      %s30 = scalar_select %p29, 0, %s28
      %s31 = sadd.s32 1, %s22
      %s32 = scalar_select %p29, %s31, %s22
      %p33 = scmp.ge.s32.totalorder %s32, 2
      %s34 = scalar_select %p33, 0, %s32
      %s35 = ssub.s32 %s23, %s30
      %p36 = scmp.eq.s32.totalorder %s35, 0
      %s38 = sadd.s32 %s37, 1
      %s39 = scalar_select %p36, %s37, %s38
      %p42 = pneg %p36
      %p43 = scmp.eq.s32.totalorder %s15, 3
      %p44 = por %p42, %p43
      %p45 = scmp.ne.s32.totalorder %s37, %s40
      %p46 = scmp.eq.s32.totalorder %s15, 0
      %p47 = por %p45, %p46
      %p48 = scmp.ne.s32.totalorder %s37, %s40
      %p49 = scmp.eq.s32.totalorder %s20, 3
      %p50 = por %p48, %p49
      %p51 = scmp.ne.s32.totalorder %s40, %s41
      %p52 = scmp.eq.s32.totalorder %s20, 0
      %p53 = por %p51, %p52
      %p54 = scmp.ne.s32.totalorder %s40, %s41
      %p55 = scmp.eq.s32.totalorder %s21, 3
      %p56 = por %p54, %p55
      %p58 = scmp.ne.s32.totalorder %s41, %s57
      %p59 = scmp.eq.s32.totalorder %s21, 0
      %p60 = por %p58, %p59
      %s61 = ssub.s32 %s22, %s34
      %p62 = scmp.eq.s32.totalorder %s61, 0
      %s64 = sadd.s32 %s63, 1
      %s65 = scalar_select %p62, %s63, %s64
      %p68 = pneg %p62
      %p69 = scmp.eq.s32.totalorder %s15, 3
      %p70 = por %p68, %p69
      %p71 = scmp.ne.s32.totalorder %s63, %s66
      %p72 = scmp.eq.s32.totalorder %s15, 0
      %p73 = por %p71, %p72
      %p74 = scmp.ne.s32.totalorder %s63, %s66
      %p75 = scmp.eq.s32.totalorder %s20, 3
      %p76 = por %p74, %p75
      %p77 = scmp.ne.s32.totalorder %s66, %s67
      %p78 = scmp.eq.s32.totalorder %s20, 0
      %p79 = por %p77, %p78
      %p80 = scmp.ne.s32.totalorder %s66, %s67
      %p81 = scmp.eq.s32.totalorder %s21, 3
      %p82 = por %p80, %p81
      %p84 = scmp.ne.s32.totalorder %s67, %s83
      %p85 = scmp.eq.s32.totalorder %s21, 0
      %p86 = por %p84, %p85
      %s88 = sadd.s32 %s87, 1
      %p91 = scmp.eq.s32.totalorder %s15, 3
      %p92 = scmp.ne.s32.totalorder %s87, %s89
      %p93 = scmp.eq.s32.totalorder %s15, 0
      %p94 = por %p92, %p93
      %p95 = scmp.ne.s32.totalorder %s87, %s89
      %p96 = scmp.eq.s32.totalorder %s20, 3
      %p97 = por %p95, %p96
      %p98 = scmp.ne.s32.totalorder %s89, %s90
      %p99 = scmp.eq.s32.totalorder %s20, 0
      %p100 = por %p98, %p99
      %p101 = scmp.ne.s32.totalorder %s89, %s90
      %p102 = scmp.eq.s32.totalorder %s21, 3
      %p103 = por %p101, %p102
      %p105 = scmp.ne.s32.totalorder %s90, %s104
      %p106 = scmp.eq.s32.totalorder %s21, 0
      %p107 = por %p105, %p106
      %s108 = ssub.s32 %s23, %s30
      %p109 = scmp.eq.s32.totalorder %s108, 0
      %s111 = sadd.s32 %s110, 1
      %s112 = scalar_select %p109, %s110, %s111
      %p115 = pneg %p109
      %p116 = scmp.eq.s32.totalorder %s15, 3
      %p117 = por %p115, %p116
      %p118 = scmp.ne.s32.totalorder %s110, %s113
      %p119 = scmp.eq.s32.totalorder %s15, 0
      %p120 = por %p118, %p119
      %p121 = scmp.ne.s32.totalorder %s110, %s113
      %p122 = scmp.eq.s32.totalorder %s20, 3
      %p123 = por %p121, %p122
      %p124 = scmp.ne.s32.totalorder %s113, %s114
      %p125 = scmp.eq.s32.totalorder %s20, 0
      %p126 = por %p124, %p125
      %p127 = scmp.ne.s32.totalorder %s113, %s114
      %p128 = scmp.eq.s32.totalorder %s21, 3
      %p129 = por %p127, %p128
      %p131 = scmp.ne.s32.totalorder %s114, %s130
      %p132 = scmp.eq.s32.totalorder %s21, 0
      %p133 = por %p131, %p132
      %s134 = ssub.s32 %s22, %s34
      %p135 = scmp.eq.s32.totalorder %s134, 0
      %s137 = sadd.s32 %s136, 1
      %s138 = scalar_select %p135, %s136, %s137
      %p141 = pneg %p135
      %p142 = scmp.eq.s32.totalorder %s15, 3
      %p143 = por %p141, %p142
      %p144 = scmp.ne.s32.totalorder %s136, %s139
      %p145 = scmp.eq.s32.totalorder %s15, 0
      %p146 = por %p144, %p145
      %p147 = scmp.ne.s32.totalorder %s136, %s139
      %p148 = scmp.eq.s32.totalorder %s20, 3
      %p149 = por %p147, %p148
      %p150 = scmp.ne.s32.totalorder %s139, %s140
      %p151 = scmp.eq.s32.totalorder %s20, 0
      %p152 = por %p150, %p151
      %p153 = scmp.ne.s32.totalorder %s139, %s140
      %p154 = scmp.eq.s32.totalorder %s21, 3
      %p155 = por %p153, %p154
      %p157 = scmp.ne.s32.totalorder %s140, %s156
      %p158 = scmp.eq.s32.totalorder %s21, 0
      %p159 = por %p157, %p158
      %s160 = ssub.s32 %s22, %s34
      %s161 = ssub.s32 %s23, %s30
      %s162 = sor.u32 %s160, %s161
      %p163 = scmp.eq.s32.totalorder %s162, 0
      %s165 = sadd.s32 %s164, 1
      %s166 = scalar_select %p163, %s164, %s165
      %p169 = pneg %p163
      %p170 = scmp.eq.s32.totalorder %s15, 3
      %p171 = por %p169, %p170
      %p172 = scmp.ne.s32.totalorder %s164, %s167
      %p173 = scmp.eq.s32.totalorder %s15, 0
      %p174 = por %p172, %p173
      %p175 = scmp.ne.s32.totalorder %s164, %s167
      %p176 = scmp.eq.s32.totalorder %s20, 3
      %p177 = por %p175, %p176
      %p178 = scmp.ne.s32.totalorder %s167, %s168
      %p179 = scmp.eq.s32.totalorder %s20, 0
      %p180 = por %p178, %p179
      %p181 = scmp.ne.s32.totalorder %s167, %s168
      %p182 = scmp.eq.s32.totalorder %s21, 3
      %p183 = por %p181, %p182
      %p185 = scmp.ne.s32.totalorder %s168, %s184
      %p186 = scmp.eq.s32.totalorder %s21, 0
      %p187 = por %p185, %p186
      %s188 = ssub.s32 %s22, %s34
      %p189 = scmp.eq.s32.totalorder %s188, 0
      %s191 = sadd.s32 %s190, 1
      %s192 = scalar_select %p189, %s190, %s191
      %p195 = pneg %p189
      %p196 = scmp.eq.s32.totalorder %s15, 3
      %p197 = por %p195, %p196
      %p198 = scmp.ne.s32.totalorder %s190, %s193
      %p199 = scmp.eq.s32.totalorder %s15, 0
      %p200 = por %p198, %p199
      %p201 = scmp.ne.s32.totalorder %s190, %s193
      %p202 = scmp.eq.s32.totalorder %s20, 3
      %p203 = por %p201, %p202
      %p204 = scmp.ne.s32.totalorder %s193, %s194
      %p205 = scmp.eq.s32.totalorder %s20, 0
      %p206 = por %p204, %p205
      %p207 = scmp.ne.s32.totalorder %s193, %s194
      %p208 = scmp.eq.s32.totalorder %s21, 3
      %p209 = por %p207, %p208
      %p211 = scmp.ne.s32.totalorder %s194, %s210
      %p212 = scmp.eq.s32.totalorder %s21, 0
      %p213 = por %p211, %p212
      %p214 = scmp.le.s32.totalorder 1, %s15
      %p215 = scmp.lt.s32.totalorder %s15, 5
      %p216 = pnand %p214, %p215
      %p217 = pneg %p216
      // Predicated region
      $region9: #{tpu_custom_call.1} parent=5 // pred_check
        _
      $region10: #{tpu_custom_call.1} parent=5 // pred_check_branch
        %219 = sbr.rel (%p216) target = $region12
      $region11: #{tpu_custom_call.1} parent=5 // pred_region
        %s220 = ssub.s32 %s15, 1
        // Predicated region
        $region13: #{tpu_custom_call.1} parent=11 // pred_check
          %p221 = pneg %p100
        $region14: #{tpu_custom_call.1} parent=11 // pred_check_branch
          %223 = sbr.rel (%p221) target = $region16
        $region15: #{tpu_custom_call.1} parent=11 // pred_region
          _
        $region16: #{tpu_custom_call.1} parent=11 // pred_fallthru
          _
      $region12: #{tpu_custom_call.1} parent=5 // pred_fallthru
        _
      %p224 = scmp.lt.s32.totalorder %s15, 4
      // Predicated region
      $region17: #{tpu_custom_call.1} parent=5 // pred_check
        %p225 = pneg %p224
      $region18: #{tpu_custom_call.1} parent=5 // pred_check_branch
        %227 = sbr.rel (%p225) target = $region20
      $region19: #{tpu_custom_call.1} parent=5 // pred_region
        // Predicated region
        $region21: #{tpu_custom_call.1} parent=19 // pred_check
          %p228 = pneg %p47
        $region22: #{tpu_custom_call.1} parent=19 // pred_check_branch
          %230 = sbr.rel (%p228) target = $region24
        $region23: #{tpu_custom_call.1} parent=19 // pred_region
          %s231 = smul.u32 16, %s23
          %p232 = scmp.lt.s32.totalorder %s231, 31
          %s233 = scalar_select %p232, %s231, 31
          %s234 = smul.addr %s233, 4
          %s235 = scalar_lea.vmem %s0, %s234
          %s236 = smul.u32 16, %s23
        $region24: #{tpu_custom_call.1} parent=19 // pred_fallthru
          _
        // Predicated region
        $region25: #{tpu_custom_call.1} parent=19 // pred_check
          %p237 = pneg %p73
        $region26: #{tpu_custom_call.1} parent=19 // pred_check_branch
          %239 = sbr.rel (%p237) target = $region28
        $region27: #{tpu_custom_call.1} parent=19 // pred_region
          %s240 = smul.u32 8, %s22
          %p241 = scmp.lt.s32.totalorder %s240, 15
          %s242 = scalar_select %p241, %s240, 15
          %s243 = smul.addr %s242, 4
          %s244 = scalar_lea.vmem %s1, %s243
          %s245 = smul.u32 8, %s22
        $region28: #{tpu_custom_call.1} parent=19 // pred_fallthru
          _
        // Predicated region
        $region29: #{tpu_custom_call.1} parent=19 // pred_check
          %p246 = pneg %p120
        $region30: #{tpu_custom_call.1} parent=19 // pred_check_branch
          %248 = sbr.rel (%p246) target = $region32
        $region31: #{tpu_custom_call.1} parent=19 // pred_region
          %p249 = scmp.lt.s32.totalorder %s23, 1
          %s250 = scalar_select %p249, %s23, 1
          %s251 = smul.addr %s250, 4
          %s252 = scalar_lea.vmem %s3, %s251
        $region32: #{tpu_custom_call.1} parent=19 // pred_fallthru
          _
        // Predicated region
        $region33: #{tpu_custom_call.1} parent=19 // pred_check
          %p253 = pneg %p146
        $region34: #{tpu_custom_call.1} parent=19 // pred_check_branch
          %255 = sbr.rel (%p253) target = $region36
        $region35: #{tpu_custom_call.1} parent=19 // pred_region
          %s256 = smul.u32 8, %s22
          %p257 = scmp.lt.s32.totalorder %s256, 15
          %s258 = scalar_select %p257, %s256, 15
          %s259 = smul.addr %s258, 8
          %s260 = scalar_lea.vmem %s4, %s259
          %s261 = smul.u32 8, %s22
        $region36: #{tpu_custom_call.1} parent=19 // pred_fallthru
          _
        // Predicated region
        $region37: #{tpu_custom_call.1} parent=19 // pred_check
          %p262 = pneg %p174
        $region38: #{tpu_custom_call.1} parent=19 // pred_check_branch
          %264 = sbr.rel (%p262) target = $region40
        $region39: #{tpu_custom_call.1} parent=19 // pred_region
          %s265 = sand.u32 %s164, 1
          %s266 = sand.u32 %s164, 1
          %s267 = smul.addr %s266, 16
          %s268 = scalar_lea.vmem [#allocation4], %s267
          %s269 = smul.u32 2, %s22
          %s270 = smul.addr %s269, 2
          %s271 = sadd.s32 %s23, %s270
          %s272 = smul.addr %s271, 8
          %s273 = scalar_lea.vmem %s5, %s272
          // Predicated region
          $region41: #{tpu_custom_call.1} parent=39 // pred_check
            _
          $region42: #{tpu_custom_call.1} parent=39 // pred_check_branch
            %275 = sbr.rel (0) target = $region44
          $region43: #{tpu_custom_call.1} parent=39 // pred_region
            // Predicated region
            $region45: #{tpu_custom_call.1} parent=43 // pred_check
              _
            $region46: #{tpu_custom_call.1} parent=43 // pred_check_branch
              %277 = sbr.rel (0) target = $region48
            $region47: #{tpu_custom_call.1} parent=43 // pred_region
              // Predicated region
              $region60: #{tpu_custom_call.1} parent=47 // pred_check
                _
              $region61: #{tpu_custom_call.1} parent=47 // pred_check_branch
                %294 = sbr.rel (0) target = $region63
              $region62: #{tpu_custom_call.1} parent=47 // pred_region
                loop: start=0, step=1, limit=1
                $region64: #{tpu_custom_call.1} parent=62 // loop_pre_header
                  _
                $region65: #{tpu_custom_call.1} parent=62 // loop_header
                  %s296 = sphi 0, %s300
                  %p297 = scmp.ge.s32.totalorder %s296, 1
                  %s301 = sphi %s273, %s273
                  %s302 = sphi %s268, %s268
                $region66: #{tpu_custom_call.1} parent=62 // loop_header_branch
                  %299 = sbr.rel (%p297) target = $region70
                $region67: #{tpu_custom_call.1} parent=62 // loop_body
                  %v303 = vld [vmem:[%s301] sm:$0xff]
                  %304 = vst [vmem:[%s302] sm:$0xff] %v303
                  %v305 = vld [vmem:[%s301 + $0x10] sm:$0xff]
                  %306 = vst [vmem:[%s302 + $0x8] sm:$0xff] %v305
                $region68: #{tpu_custom_call.1} parent=62 // loop_footer
                  %s300 = sadd.s32 1, %s296
                $region69: #{tpu_custom_call.1} parent=62 // loop_footer_branch
                  %295 = sbr.rel target = $region65
                $region70: #{tpu_custom_call.1} parent=62 // loop_exit
                  _
              $region63: #{tpu_custom_call.1} parent=47 // pred_fallthru
                _
              // Predicated region
              $region71: #{tpu_custom_call.1} parent=47 // pred_check
                _
              $region72: #{tpu_custom_call.1} parent=47 // pred_check_branch
                %308 = sbr.rel target = $region74
              $region73: #{tpu_custom_call.1} parent=47 // pred_region
                _
              $region74: #{tpu_custom_call.1} parent=47 // pred_fallthru
                _
            $region48: #{tpu_custom_call.1} parent=43 // pred_fallthru
              _
            // Predicated region
            $region49: #{tpu_custom_call.1} parent=43 // pred_check
              _
            $region50: #{tpu_custom_call.1} parent=43 // pred_check_branch
              %279 = sbr.rel target = $region52
            $region51: #{tpu_custom_call.1} parent=43 // pred_region
              loop: start=0, step=1, limit=1
              $region53: #{tpu_custom_call.1} parent=51 // loop_pre_header
                _
              $region54: #{tpu_custom_call.1} parent=51 // loop_header
                %s282 = sphi 0, %s286
                %p283 = scmp.ge.s32.totalorder %s282, 1
                %s287 = sphi %s273, %s273
                %s288 = sphi %s268, %s268
              $region55: #{tpu_custom_call.1} parent=51 // loop_header_branch
                %285 = sbr.rel (%p283) target = $region59
              $region56: #{tpu_custom_call.1} parent=51 // loop_body
                %v289 = vld [vmem:[%s287] sm:$0xff]
                %290 = vst [vmem:[%s288] sm:$0xff] %v289
                %v291 = vld [vmem:[%s287 + $0x10] sm:$0xff]
                %292 = vst [vmem:[%s288 + $0x8] sm:$0xff] %v291
              $region57: #{tpu_custom_call.1} parent=51 // loop_footer
                %s286 = sadd.s32 1, %s282
              $region58: #{tpu_custom_call.1} parent=51 // loop_footer_branch
                %281 = sbr.rel target = $region54
              $region59: #{tpu_custom_call.1} parent=51 // loop_exit
                _
            $region52: #{tpu_custom_call.1} parent=43 // pred_fallthru
              _
          $region44: #{tpu_custom_call.1} parent=39 // pred_fallthru
            _
          %309 = vnop
        $region40: #{tpu_custom_call.1} parent=19 // pred_fallthru
          _
      $region20: #{tpu_custom_call.1} parent=5 // pred_fallthru
        _
      %p310 = scmp.le.s32.totalorder 1, %s15
      %p311 = scmp.lt.s32.totalorder %s15, 5
      %p312 = pnand %p310, %p311
      %p313 = pneg %p312
      // Predicated region
      $region75: #{tpu_custom_call.1} parent=5 // pred_check
        _
      $region76: #{tpu_custom_call.1} parent=5 // pred_check_branch
        %315 = sbr.rel (%p312) target = $region78
      $region77: #{tpu_custom_call.1} parent=5 // pred_region
        %s316 = ssub.s32 %s15, 1
        %s317 = sand.u32 %s167, 1
        %s318 = sand.u32 %s167, 1
        %s319 = smul.addr %s318, 16
        %s320 = scalar_lea.vmem [#allocation4], %s319
        // Predicated region
        $region79: #{tpu_custom_call.1} parent=77 // pred_check
          %p321 = pneg %p180
        $region80: #{tpu_custom_call.1} parent=77 // pred_check_branch
          %323 = sbr.rel (%p321) target = $region82
        $region81: #{tpu_custom_call.1} parent=77 // pred_region
          _
        $region82: #{tpu_custom_call.1} parent=77 // pred_fallthru
          _
        %s324 = smul.u32 16, %s25
        %p325 = scmp.lt.s32.totalorder %s324, 31
        %s326 = scalar_select %p325, %s324, 31
        %s327 = smul.addr %s326, 4
        %s328 = scalar_lea.vmem %s0, %s327
        %p329 = pneg %p53
        %p330 = pneg %p50
        %s331 = smul.u32 8, %s24
        %p332 = scmp.lt.s32.totalorder %s331, 15
        %s333 = scalar_select %p332, %s331, 15
        %s334 = smul.addr %s333, 4
        %s335 = scalar_lea.vmem %s1, %s334
        %p336 = pneg %p79
        %p337 = pneg %p76
        %p338 = pneg %p100
        %p339 = pneg %p97
        %p340 = scmp.lt.s32.totalorder %s25, 1
        %s341 = scalar_select %p340, %s25, 1
        %s342 = smul.addr %s341, 4
        %s343 = scalar_lea.vmem %s3, %s342
        %p344 = pneg %p126
        %p345 = pneg %p123
        %s346 = smul.u32 8, %s24
        %p347 = scmp.lt.s32.totalorder %s346, 15
        %s348 = scalar_select %p347, %s346, 15
        %s349 = smul.addr %s348, 8
        %s350 = scalar_lea.vmem %s4, %s349
        %p351 = pneg %p152
        %p352 = pneg %p149
        %s353 = sand.u32 %s167, 1
        %s354 = sand.u32 %s167, 1
        %s355 = smul.addr %s354, 16
        %s356 = scalar_lea.vmem [#allocation4], %s355
        %p357 = pneg %p180
        %p358 = pneg %p177
        %p359 = pneg %p206
        %p360 = pneg %p203
        %s361 = sand.u32 %s193, 1
        %s362 = scalar_lea.sflag [#allocation6], %s361
        %s363 = sand.u32 %s193, 1
        %s364 = smul.addr %s363, 64
        %s365 = scalar_lea.vmem [#allocation5], %s364
        %s366 = smul.u32 16, %s25
        %p367 = scmp.lt.s32.totalorder %s366, 31
        %s368 = scalar_select %p367, %s366, 31
        %s369 = smul.addr %s368, 4
        %s370 = scalar_lea.vmem %s0, %s369
        %s371 = smul.u32 16, %s25
        %s372 = smul.u32 8, %s24
        %p373 = scmp.lt.s32.totalorder %s372, 15
        %s374 = scalar_select %p373, %s372, 15
        %s375 = smul.addr %s374, 4
        %s376 = scalar_lea.vmem %s1, %s375
        %s377 = smul.u32 8, %s24
        %p378 = scmp.lt.s32.totalorder %s25, 1
        %s379 = scalar_select %p378, %s25, 1
        %s380 = smul.addr %s379, 4
        %s381 = scalar_lea.vmem %s3, %s380
        %s382 = smul.u32 8, %s24
        %p383 = scmp.lt.s32.totalorder %s382, 15
        %s384 = scalar_select %p383, %s382, 15
        %s385 = smul.addr %s384, 8
        %s386 = scalar_lea.vmem %s4, %s385
        %s387 = smul.u32 8, %s24
        %s388 = smul.u32 2, %s24
        %s389 = smul.u32 8, %s24
        %p391 = scmp.eq.s32.totalorder %s25, 0
        // Predicated region
        $region83: #{tpu_custom_call.1} parent=77 // pred_check
          %p392 = pneg %p391
        $region84: #{tpu_custom_call.1} parent=77 // pred_check_branch
          %394 = sbr.rel (%p392) target = $region86
        $region85: #{tpu_custom_call.1} parent=77 // pred_region
          %vm395 = vcmask 31744
          %396 = vst.msk [vmem:[#allocation2] sm:$0xff] %vm395, -1e+30
          %397 = vst.msk [vmem:[#allocation2 + $0x8] sm:$0xff] %vm395, -1e+30
          %398 = vst.msk [vmem:[#allocation2 + $0x10] sm:$0xff] %vm395, -1e+30
          %399 = vst.msk [vmem:[#allocation2 + $0x18] sm:$0xff] %vm395, -1e+30
          %400 = vst.msk [vmem:[#allocation2 + $0x20] sm:$0xff] %vm395, -1e+30
          %401 = vst.msk [vmem:[#allocation2 + $0x28] sm:$0xff] %vm395, -1e+30
          %402 = vst.msk [vmem:[#allocation2 + $0x30] sm:$0xff] %vm395, -1e+30
          %403 = vst.msk [vmem:[#allocation2 + $0x38] sm:$0xff] %vm395, -1e+30
          %404 = vst.msk [vmem:[#allocation3] sm:$0xff] %vm395, 0.0
          %405 = vst.msk [vmem:[#allocation3 + $0x8] sm:$0xff] %vm395, 0.0
          %406 = vst.msk [vmem:[#allocation3 + $0x10] sm:$0xff] %vm395, 0.0
          %407 = vst.msk [vmem:[#allocation3 + $0x18] sm:$0xff] %vm395, 0.0
          %408 = vst.msk [vmem:[#allocation3 + $0x20] sm:$0xff] %vm395, 0.0
          %409 = vst.msk [vmem:[#allocation3 + $0x28] sm:$0xff] %vm395, 0.0
          %410 = vst.msk [vmem:[#allocation3 + $0x30] sm:$0xff] %vm395, 0.0
          %411 = vst.msk [vmem:[#allocation3 + $0x38] sm:$0xff] %vm395, 0.0
          %412 = vst [vmem:[%s365] sm:$0xff] 0.0
          %413 = vst [vmem:[%s365 + $0x8] sm:$0xff] 0.0
          %414 = vst [vmem:[%s365 + $0x10] sm:$0xff] 0.0
          %415 = vst [vmem:[%s365 + $0x18] sm:$0xff] 0.0
          %416 = vst [vmem:[%s365 + $0x20] sm:$0xff] 0.0
          %417 = vst [vmem:[%s365 + $0x28] sm:$0xff] 0.0
          %418 = vst [vmem:[%s365 + $0x30] sm:$0xff] 0.0
          %419 = vst [vmem:[%s365 + $0x38] sm:$0xff] 0.0
        $region86: #{tpu_custom_call.1} parent=77 // pred_fallthru
          _
        %v420 = vld [vmem:[%s370] sm:$0xf]
        %v421 = vld [vmem:[%s370 + $0x4] sm:$0xf]
        %v422 = vld [vmem:[%s370 + $0x8] sm:$0xf]
        %v423 = vld [vmem:[%s370 + $0xc] sm:$0xf]
        %v424 = vld [vmem:[%s370 + $0x10] sm:$0xf]
        %v425 = vld [vmem:[%s370 + $0x14] sm:$0xf]
        %v426 = vld [vmem:[%s370 + $0x18] sm:$0xf]
        %v427 = vld [vmem:[%s370 + $0x1c] sm:$0xf]
        %v428 = vld [vmem:[%s370 + $0x20] sm:$0xf]
        %v429 = vld [vmem:[%s370 + $0x24] sm:$0xf]
        %v430 = vld [vmem:[%s370 + $0x28] sm:$0xf]
        %v431 = vld [vmem:[%s370 + $0x2c] sm:$0xf]
        %v432 = vld [vmem:[%s370 + $0x30] sm:$0xf]
        %v433 = vld [vmem:[%s370 + $0x34] sm:$0xf]
        %v434 = vld [vmem:[%s370 + $0x38] sm:$0xf]
        %v435 = vld [vmem:[%s370 + $0x3c] sm:$0xf]
        %v436 = vld [vmem:[%s2] sm:$0xf]
        %v437 = vld [vmem:[%s2 + $0x4] sm:$0xf]
        %v454 = vunpack.c.l.b16 %v420
        %v455 = vunpack.c.l.b16 %v421
        %v456 = vunpack.c.l.b16 %v422
        %v457 = vunpack.c.l.b16 %v423
        %v458 = vunpack.c.l.b16 %v424
        %v459 = vunpack.c.l.b16 %v425
        %v460 = vunpack.c.l.b16 %v426
        %v461 = vunpack.c.l.b16 %v427
        %v462 = vunpack.c.l.b16 %v428
        %v463 = vunpack.c.l.b16 %v429
        %v464 = vunpack.c.l.b16 %v430
        %v465 = vunpack.c.l.b16 %v431
        %v466 = vunpack.c.l.b16 %v432
        %v467 = vunpack.c.l.b16 %v433
        %v468 = vunpack.c.l.b16 %v434
        %v469 = vunpack.c.l.b16 %v435
        %v470 = vpack.c.b16 %v455, %v454
        %v471 = vpack.c.b16 %v457, %v456
        %v472 = vpack.c.b16 %v459, %v458
        %v473 = vpack.c.b16 %v461, %v460
        %v474 = vpack.c.b16 %v463, %v462
        %v475 = vpack.c.b16 %v465, %v464
        %v476 = vpack.c.b16 %v467, %v466
        %v477 = vpack.c.b16 %v469, %v468
        %v480 = vunpack.c.l.b16 %v436
        %v481 = vunpack.c.l.b16 %v437
        %v482 = vpack.c.b16 %v481, %v480
        %vm484 = vcmask 130048
        %v486 = vsel %vm484, %v470, 0
        %v489 = vsel %vm484, %v471, 0
        %v492 = vsel %vm484, %v472, 0
        %v495 = vsel %vm484, %v473, 0
        %v498 = vsel %vm484, %v474, 0
        %v501 = vsel %vm484, %v475, 0
        %v504 = vsel %vm484, %v476, 0
        %v507 = vsel %vm484, %v477, 0
        %509 = vmatprep.subr.bf16.mxu0 0
        %510 = vmatpush1.bf16.msra.mxu0 %v482
        %511 = vmatprep.subr.bf16.mxu0 0
        %512 = vmatpush1.bf16.msra.mxu0 0
        %513 = vmatprep.subr.bf16.mxu0 0
        %514 = vmatpush1.bf16.msra.mxu0 0
        %515 = vmatprep.subr.bf16.mxu0 0
        %516 = vmatpush1.bf16.msra.mxu0 0
        %517 = vmatprep.subr.bf16.mxu0 0
        %518 = vmatpush1.bf16.msra.mxu0 0
        %519 = vmatprep.subr.bf16.mxu0 0
        %520 = vmatpush1.bf16.msra.mxu0 0
        %521 = vmatprep.subr.bf16.mxu0 0
        %522 = vmatpush1.bf16.msra.mxu0 0
        %523 = vmatprep.subr.bf16.mxu0 0
        %524 = vmatpush1.bf16.msra.mxu0 0
        %525 = vmatprep.subr.bf16.mxu0 0
        %526 = vmatpush1.bf16.msra.mxu0 0
        %527 = vmatprep.subr.bf16.mxu0 0
        %528 = vmatpush1.bf16.msra.mxu0 0
        %529 = vmatprep.subr.bf16.mxu0 0
        %530 = vmatpush1.bf16.msra.mxu0 0
        %531 = vmatprep.subr.bf16.mxu0 0
        %532 = vmatpush1.bf16.msra.mxu0 0
        %533 = vmatprep.subr.bf16.mxu0 0
        %534 = vmatpush1.bf16.msra.mxu0 0
        %535 = vmatprep.subr.bf16.mxu0 0
        %536 = vmatpush1.bf16.msra.mxu0 0
        %537 = vmatprep.subr.bf16.mxu0 0
        %538 = vmatpush1.bf16.msra.mxu0 0
        %539 = vmatprep.subr.bf16.mxu0 0
        %540 = vmatpush1.bf16.msra.mxu0 0
        %541 = vmatprep.mubr.bf16.mxu0 0
        %542 = vmatmul.mubr.bf16.gmra.mrb[0].mxu0 %v486
        %v543 = vpop.f32.mrb[0].mxu0
        %v544 = vadd.f32 0.0, %v543
        %v545 = vpop.f32.mrb[0].mxu0
        %v546 = vpop.f32.mrb[0].mxu0
        %v547 = vadd.f32 0.0, %v546
        %v548 = vpop.f32.mrb[0].mxu0
        %549 = vmatprep.mubr.bf16.mxu0 0
        %550 = vmatmul.mubr.bf16.gmra.mrb[0].mxu0 %v489
        %v551 = vpop.f32.mrb[0].mxu0
        %v552 = vadd.f32 0.0, %v551
        %v553 = vpop.f32.mrb[0].mxu0
        %v554 = vpop.f32.mrb[0].mxu0
        %v555 = vadd.f32 0.0, %v554
        %v556 = vpop.f32.mrb[0].mxu0
        %557 = vmatprep.mubr.bf16.mxu0 0
        %558 = vmatmul.mubr.bf16.gmra.mrb[0].mxu0 %v492
        %v559 = vpop.f32.mrb[0].mxu0
        %v560 = vadd.f32 0.0, %v559
        %v561 = vpop.f32.mrb[0].mxu0
        %v562 = vpop.f32.mrb[0].mxu0
        %v563 = vadd.f32 0.0, %v562
        %v564 = vpop.f32.mrb[0].mxu0
        %565 = vmatprep.mubr.bf16.mxu0 0
        %566 = vmatmul.mubr.bf16.gmra.mrb[0].mxu0 %v495
        %v567 = vpop.f32.mrb[0].mxu0
        %v568 = vadd.f32 0.0, %v567
        %v569 = vpop.f32.mrb[0].mxu0
        %v570 = vpop.f32.mrb[0].mxu0
        %v571 = vadd.f32 0.0, %v570
        %v572 = vpop.f32.mrb[0].mxu0
        %573 = vmatprep.mubr.bf16.mxu0 0
        %574 = vmatmul.mubr.bf16.gmra.mrb[0].mxu0 %v498
        %v575 = vpop.f32.mrb[0].mxu0
        %v576 = vadd.f32 0.0, %v575
        %v577 = vpop.f32.mrb[0].mxu0
        %v578 = vpop.f32.mrb[0].mxu0
        %v579 = vadd.f32 0.0, %v578
        %v580 = vpop.f32.mrb[0].mxu0
        %581 = vmatprep.mubr.bf16.mxu0 0
        %582 = vmatmul.mubr.bf16.gmra.mrb[0].mxu0 %v501
        %v583 = vpop.f32.mrb[0].mxu0
        %v584 = vadd.f32 0.0, %v583
        %v585 = vpop.f32.mrb[0].mxu0
        %v586 = vpop.f32.mrb[0].mxu0
        %v587 = vadd.f32 0.0, %v586
        %v588 = vpop.f32.mrb[0].mxu0
        %589 = vmatprep.mubr.bf16.mxu0 0
        %590 = vmatmul.mubr.bf16.gmra.mrb[0].mxu0 %v504
        %v591 = vpop.f32.mrb[0].mxu0
        %v592 = vadd.f32 0.0, %v591
        %v593 = vpop.f32.mrb[0].mxu0
        %v594 = vpop.f32.mrb[0].mxu0
        %v595 = vadd.f32 0.0, %v594
        %v596 = vpop.f32.mrb[0].mxu0
        %597 = vmatprep.mubr.bf16.mxu0 0
        %598 = vmatmul.mubr.bf16.gmra.mrb[0].mxu0 %v507
        %v599 = vpop.f32.mrb[0].mxu0
        %v600 = vadd.f32 0.0, %v599
        %v601 = vpop.f32.mrb[0].mxu0
        %v602 = vpop.f32.mrb[0].mxu0
        %v603 = vadd.f32 0.0, %v602
        %v604 = vpop.f32.mrb[0].mxu0
        %605 = vdwg.mxu0
        %v606 = vpack.c.bf16 %v547, %v544
        %v607 = vpack.c.bf16 %v555, %v552
        %v608 = vpack.c.bf16 %v563, %v560
        %v609 = vpack.c.bf16 %v571, %v568
        %v610 = vpack.c.bf16 %v579, %v576
        %v611 = vpack.c.bf16 %v587, %v584
        %v612 = vpack.c.bf16 %v595, %v592
        %v613 = vpack.c.bf16 %v603, %v600
        %v614 = vld [vmem:[%s381] sm:$0xf]
        %v615 = vld [vmem:[%s386] sm:$0xff]
        %v616 = vld [vmem:[%s386 + $0x8] sm:$0xff]
        %v617 = vld [vmem:[%s386 + $0x10] sm:$0xff]
        %v618 = vld [vmem:[%s386 + $0x18] sm:$0xff]
        %v619 = vld [vmem:[%s386 + $0x20] sm:$0xff]
        %v620 = vld [vmem:[%s386 + $0x28] sm:$0xff]
        %v621 = vld [vmem:[%s386 + $0x30] sm:$0xff]
        %v622 = vld [vmem:[%s386 + $0x38] sm:$0xff]
        %v623 = vld [vmem:[%s320] sm:$0xff]
        %v624 = vld [vmem:[%s320 + $0x8] sm:$0xff]
        %v625 = vunpack.c.0.s8 %v623
        %v626 = vunpack.c.1.s8 %v623
        %v627 = vunpack.c.2.s8 %v623
        %v628 = vunpack.c.3.s8 %v623
        %v629 = vunpack.c.0.s8 %v624
        %v630 = vunpack.c.1.s8 %v624
        %v631 = vunpack.c.2.s8 %v624
        %v632 = vunpack.c.3.s8 %v624
        %v633 = vcvt.s32.f32 %v625
        %v634 = vcvt.s32.f32 %v626
        %v635 = vcvt.s32.f32 %v627
        %v636 = vcvt.s32.f32 %v628
        %v637 = vcvt.s32.f32 %v629
        %v638 = vcvt.s32.f32 %v630
        %v639 = vcvt.s32.f32 %v631
        %v640 = vcvt.s32.f32 %v632
        %v641 = vsub.f32 %v633, 1.0
        %v642 = vsub.f32 %v634, 1.0
        %v643 = vsub.f32 %v635, 1.0
        %v644 = vsub.f32 %v636, 1.0
        %v645 = vsub.f32 %v637, 1.0
        %v646 = vsub.f32 %v638, 1.0
        %v647 = vsub.f32 %v639, 1.0
        %v648 = vsub.f32 %v640, 1.0
        %v649 = vmul.f32 %v641, 1e+30
        %v650 = vmul.f32 %v642, 1e+30
        %v651 = vmul.f32 %v643, 1e+30
        %v652 = vmul.f32 %v644, 1e+30
        %v653 = vmul.f32 %v645, 1e+30
        %v654 = vmul.f32 %v646, 1e+30
        %v655 = vmul.f32 %v647, 1e+30
        %v656 = vmul.f32 %v648, 1e+30
        %v657 = vld [vmem:[#allocation2] sm:$0xff]
        %v658 = vld [vmem:[#allocation2 + $0x8] sm:$0xff]
        %v659 = vld [vmem:[#allocation2 + $0x10] sm:$0xff]
        %v660 = vld [vmem:[#allocation2 + $0x18] sm:$0xff]
        %v661 = vld [vmem:[#allocation2 + $0x20] sm:$0xff]
        %v662 = vld [vmem:[#allocation2 + $0x28] sm:$0xff]
        %v663 = vld [vmem:[#allocation2 + $0x30] sm:$0xff]
        %v664 = vld [vmem:[#allocation2 + $0x38] sm:$0xff]
        %v665 = vld [vmem:[#allocation3] sm:$0xff]
        %v666 = vld [vmem:[#allocation3 + $0x8] sm:$0xff]
        %v667 = vld [vmem:[#allocation3 + $0x10] sm:$0xff]
        %v668 = vld [vmem:[#allocation3 + $0x18] sm:$0xff]
        %v669 = vld [vmem:[#allocation3 + $0x20] sm:$0xff]
        %v670 = vld [vmem:[#allocation3 + $0x28] sm:$0xff]
        %v671 = vld [vmem:[#allocation3 + $0x30] sm:$0xff]
        %v672 = vld [vmem:[#allocation3 + $0x38] sm:$0xff]
        %v673 = vld [vmem:[%s365] sm:$0xff]
        %v674 = vld [vmem:[%s365 + $0x8] sm:$0xff]
        %v675 = vld [vmem:[%s365 + $0x10] sm:$0xff]
        %v676 = vld [vmem:[%s365 + $0x18] sm:$0xff]
        %v677 = vld [vmem:[%s365 + $0x20] sm:$0xff]
        %v678 = vld [vmem:[%s365 + $0x28] sm:$0xff]
        %v679 = vld [vmem:[%s365 + $0x30] sm:$0xff]
        %v680 = vld [vmem:[%s365 + $0x38] sm:$0xff]
        %682 = vset.pattern.permute.xlu0 0
        %683 = vperm.xlu0 %682, %v615
        %v684 = vpop.permute.xlu0 %683
        %687 = vset.pattern.permute.xlu0 0
        %688 = vperm.xlu0 %687, %v616
        %v689 = vpop.permute.xlu0 %688
        %692 = vset.pattern.permute.xlu0 0
        %693 = vperm.xlu0 %692, %v617
        %v694 = vpop.permute.xlu0 %693
        %697 = vset.pattern.permute.xlu0 0
        %698 = vperm.xlu0 %697, %v618
        %v699 = vpop.permute.xlu0 %698
        %702 = vset.pattern.permute.xlu0 0
        %703 = vperm.xlu0 %702, %v619
        %v704 = vpop.permute.xlu0 %703
        %707 = vset.pattern.permute.xlu0 0
        %708 = vperm.xlu0 %707, %v620
        %v709 = vpop.permute.xlu0 %708
        %712 = vset.pattern.permute.xlu0 0
        %713 = vperm.xlu0 %712, %v621
        %v714 = vpop.permute.xlu0 %713
        %717 = vset.pattern.permute.xlu0 0
        %718 = vperm.xlu0 %717, %v622
        %v719 = vpop.permute.xlu0 %718
        %v721 = vlaneseq
        %v722 = vshrl.u32 %v721, 7
        %v723 = vsub.s32 0, %v722
        %v724 = vrot.slane %v614, %v723
        %v725 = vadd.f32 %v684, %v724
        %v726 = vadd.f32 %v689, %v724
        %v727 = vadd.f32 %v694, %v724
        %v728 = vadd.f32 %v699, %v724
        %v729 = vadd.f32 %v704, %v724
        %v730 = vadd.f32 %v709, %v724
        %v731 = vadd.f32 %v714, %v724
        %v732 = vadd.f32 %v719, %v724
        %v733 = vmul.f32 %v725, 0.01
        %v734 = vmul.f32 %v726, 0.01
        %v735 = vmul.f32 %v727, 0.01
        %v736 = vmul.f32 %v728, 0.01
        %v737 = vmul.f32 %v729, 0.01
        %v738 = vmul.f32 %v730, 0.01
        %v739 = vmul.f32 %v731, 0.01
        %v740 = vmul.f32 %v732, 0.01
        %v741 = vmax.f32 %v725, %v733
        %v742 = vmax.f32 %v726, %v734
        %v743 = vmax.f32 %v727, %v735
        %v744 = vmax.f32 %v728, %v736
        %v745 = vmax.f32 %v729, %v737
        %v746 = vmax.f32 %v730, %v738
        %v747 = vmax.f32 %v731, %v739
        %v748 = vmax.f32 %v732, %v740
        %v749 = vadd.f32 %v741, %v649
        %v750 = vadd.f32 %v742, %v650
        %v751 = vadd.f32 %v743, %v651
        %v752 = vadd.f32 %v744, %v652
        %v753 = vadd.f32 %v745, %v653
        %v754 = vadd.f32 %v746, %v654
        %v755 = vadd.f32 %v747, %v655
        %v756 = vadd.f32 %v748, %v656
        %757 = vmax.xlane.f32.xlu0 %v749
        %v758 = vpop.xlane.xlu0 %757
        %759 = vmax.xlane.f32.xlu0 %v750
        %v760 = vpop.xlane.xlu0 %759
        %761 = vmax.xlane.f32.xlu0 %v751
        %v762 = vpop.xlane.xlu0 %761
        %763 = vmax.xlane.f32.xlu0 %v752
        %v764 = vpop.xlane.xlu0 %763
        %765 = vmax.xlane.f32.xlu0 %v753
        %v766 = vpop.xlane.xlu0 %765
        %767 = vmax.xlane.f32.xlu0 %v754
        %v768 = vpop.xlane.xlu0 %767
        %769 = vmax.xlane.f32.xlu0 %v755
        %v770 = vpop.xlane.xlu0 %769
        %771 = vmax.xlane.f32.xlu0 %v756
        %v772 = vpop.xlane.xlu0 %771
        %v773 = vmax.f32 %v657, %v758
        %v774 = vmax.f32 %v658, %v760
        %v775 = vmax.f32 %v659, %v762
        %v776 = vmax.f32 %v660, %v764
        %v777 = vmax.f32 %v661, %v766
        %v778 = vmax.f32 %v662, %v768
        %v779 = vmax.f32 %v663, %v770
        %v780 = vmax.f32 %v664, %v772
        %v781 = vsub.f32 %v657, %v773
        %v782 = vsub.f32 %v658, %v774
        %v783 = vsub.f32 %v659, %v775
        %v784 = vsub.f32 %v660, %v776
        %v785 = vsub.f32 %v661, %v777
        %v786 = vsub.f32 %v662, %v778
        %v787 = vsub.f32 %v663, %v779
        %v788 = vsub.f32 %v664, %v780
        %v789 = vmul.f32 %v781, 1.442695
        %v790 = vpow.pop %v789
        %v791 = vmul.f32 %v782, 1.442695
        %v792 = vpow.pop %v791
        %v793 = vmul.f32 %v783, 1.442695
        %v794 = vpow.pop %v793
        %v795 = vmul.f32 %v784, 1.442695
        %v796 = vpow.pop %v795
        %v797 = vmul.f32 %v785, 1.442695
        %v798 = vpow.pop %v797
        %v799 = vmul.f32 %v786, 1.442695
        %v800 = vpow.pop %v799
        %v801 = vmul.f32 %v787, 1.442695
        %v802 = vpow.pop %v801
        %v803 = vmul.f32 %v788, 1.442695
        %v804 = vpow.pop %v803
        %806 = vset.pattern.permute.xlu0 0
        %807 = vperm.xlu0 %806, %v773
        %v808 = vpop.permute.xlu0 %807
        %811 = vset.pattern.permute.xlu0 0
        %812 = vperm.xlu0 %811, %v774
        %v813 = vpop.permute.xlu0 %812
        %816 = vset.pattern.permute.xlu0 0
        %817 = vperm.xlu0 %816, %v775
        %v818 = vpop.permute.xlu0 %817
        %821 = vset.pattern.permute.xlu0 0
        %822 = vperm.xlu0 %821, %v776
        %v823 = vpop.permute.xlu0 %822
        %826 = vset.pattern.permute.xlu0 0
        %827 = vperm.xlu0 %826, %v777
        %v828 = vpop.permute.xlu0 %827
        %831 = vset.pattern.permute.xlu0 0
        %832 = vperm.xlu0 %831, %v778
        %v833 = vpop.permute.xlu0 %832
        %836 = vset.pattern.permute.xlu0 0
        %837 = vperm.xlu0 %836, %v779
        %v838 = vpop.permute.xlu0 %837
        %841 = vset.pattern.permute.xlu0 0
        %842 = vperm.xlu0 %841, %v780
        %v843 = vpop.permute.xlu0 %842
        %v845 = vsub.f32 %v749, %v808
        %v846 = vsub.f32 %v750, %v813
        %v847 = vsub.f32 %v751, %v818
        %v848 = vsub.f32 %v752, %v823
        %v849 = vsub.f32 %v753, %v828
        %v850 = vsub.f32 %v754, %v833
        %v851 = vsub.f32 %v755, %v838
        %v852 = vsub.f32 %v756, %v843
        %v853 = vmul.f32 %v845, 1.442695
        %v854 = vpow.pop %v853
        %v855 = vmul.f32 %v846, 1.442695
        %v856 = vpow.pop %v855
        %v857 = vmul.f32 %v847, 1.442695
        %v858 = vpow.pop %v857
        %v859 = vmul.f32 %v848, 1.442695
        %v860 = vpow.pop %v859
        %v861 = vmul.f32 %v849, 1.442695
        %v862 = vpow.pop %v861
        %v863 = vmul.f32 %v850, 1.442695
        %v864 = vpow.pop %v863
        %v865 = vmul.f32 %v851, 1.442695
        %v866 = vpow.pop %v865
        %v867 = vmul.f32 %v852, 1.442695
        %v868 = vpow.pop %v867
        %v869 = vmul.f32 %v790, %v665
        %v870 = vmul.f32 %v792, %v666
        %v871 = vmul.f32 %v794, %v667
        %v872 = vmul.f32 %v796, %v668
        %v873 = vmul.f32 %v798, %v669
        %v874 = vmul.f32 %v800, %v670
        %v875 = vmul.f32 %v802, %v671
        %v876 = vmul.f32 %v804, %v672
        %877 = vadd.xlane.f32.xlu0 %v854
        %v878 = vpop.xlane.xlu0 %877
        %879 = vadd.xlane.f32.xlu0 %v856
        %v880 = vpop.xlane.xlu0 %879
        %881 = vadd.xlane.f32.xlu0 %v858
        %v882 = vpop.xlane.xlu0 %881
        %883 = vadd.xlane.f32.xlu0 %v860
        %v884 = vpop.xlane.xlu0 %883
        %885 = vadd.xlane.f32.xlu0 %v862
        %v886 = vpop.xlane.xlu0 %885
        %887 = vadd.xlane.f32.xlu0 %v864
        %v888 = vpop.xlane.xlu0 %887
        %889 = vadd.xlane.f32.xlu0 %v866
        %v890 = vpop.xlane.xlu0 %889
        %891 = vadd.xlane.f32.xlu0 %v868
        %v892 = vpop.xlane.xlu0 %891
        %v893 = vadd.f32 %v869, %v878
        %v894 = vadd.f32 %v870, %v880
        %v895 = vadd.f32 %v871, %v882
        %v896 = vadd.f32 %v872, %v884
        %v897 = vadd.f32 %v873, %v886
        %v898 = vadd.f32 %v874, %v888
        %v899 = vadd.f32 %v875, %v890
        %v900 = vadd.f32 %v876, %v892
        %v901 = vpack.c.bf16 %v856, %v854
        %v902 = vpack.c.bf16 %v860, %v858
        %v903 = vpack.c.bf16 %v864, %v862
        %v904 = vpack.c.bf16 %v868, %v866
        %905 = vmatprep.subr.bf16.mxu0 0
        %906 = vmatpush1.bf16.msra.mxu0 %v606
        %907 = vmatprep.subr.bf16.mxu0 0
        %908 = vmatpush1.bf16.msra.mxu0 %v607
        %909 = vmatprep.subr.bf16.mxu0 0
        %910 = vmatpush1.bf16.msra.mxu0 %v608
        %911 = vmatprep.subr.bf16.mxu0 0
        %912 = vmatpush1.bf16.msra.mxu0 %v609
        %913 = vmatprep.subr.bf16.mxu0 0
        %914 = vmatpush1.bf16.msra.mxu0 %v610
        %915 = vmatprep.subr.bf16.mxu0 0
        %916 = vmatpush1.bf16.msra.mxu0 %v611
        %917 = vmatprep.subr.bf16.mxu0 0
        %918 = vmatpush1.bf16.msra.mxu0 %v612
        %919 = vmatprep.subr.bf16.mxu0 0
        %920 = vmatpush1.bf16.msra.mxu0 %v613
        %921 = vmatprep.subr.bf16.mxu0 0
        %922 = vmatpush1.bf16.msra.mxu0 0
        %923 = vmatprep.subr.bf16.mxu0 0
        %924 = vmatpush1.bf16.msra.mxu0 0
        %925 = vmatprep.subr.bf16.mxu0 0
        %926 = vmatpush1.bf16.msra.mxu0 0
        %927 = vmatprep.subr.bf16.mxu0 0
        %928 = vmatpush1.bf16.msra.mxu0 0
        %929 = vmatprep.subr.bf16.mxu0 0
        %930 = vmatpush1.bf16.msra.mxu0 0
        %931 = vmatprep.subr.bf16.mxu0 0
        %932 = vmatpush1.bf16.msra.mxu0 0
        %933 = vmatprep.subr.bf16.mxu0 0
        %934 = vmatpush1.bf16.msra.mxu0 0
        %935 = vmatprep.subr.bf16.mxu0 0
        %936 = vmatpush1.bf16.msra.mxu0 0
        %937 = vmatprep.mubr.bf16.mxu0 0
        %938 = vmatmul.mubr.bf16.gmra.mrb[0].mxu0 %v901
        %v939 = vpop.f32.mrb[0].mxu0
        %v940 = vadd.f32 0.0, %v939
        %v941 = vpop.f32.mrb[0].mxu0
        %v942 = vpop.f32.mrb[0].mxu0
        %v943 = vadd.f32 0.0, %v942
        %v944 = vpop.f32.mrb[0].mxu0
        %945 = vmatprep.mubr.bf16.mxu0 0
        %946 = vmatmul.mubr.bf16.gmra.mrb[0].mxu0 %v902
        %v947 = vpop.f32.mrb[0].mxu0
        %v948 = vadd.f32 0.0, %v947
        %v949 = vpop.f32.mrb[0].mxu0
        %v950 = vpop.f32.mrb[0].mxu0
        %v951 = vadd.f32 0.0, %v950
        %v952 = vpop.f32.mrb[0].mxu0
        %953 = vmatprep.mubr.bf16.mxu0 0
        %954 = vmatmul.mubr.bf16.gmra.mrb[0].mxu0 %v903
        %v955 = vpop.f32.mrb[0].mxu0
        %v956 = vadd.f32 0.0, %v955
        %v957 = vpop.f32.mrb[0].mxu0
        %v958 = vpop.f32.mrb[0].mxu0
        %v959 = vadd.f32 0.0, %v958
        %v960 = vpop.f32.mrb[0].mxu0
        %961 = vmatprep.mubr.bf16.mxu0 0
        %962 = vmatmul.mubr.bf16.gmra.mrb[0].mxu0 %v904
        %v963 = vpop.f32.mrb[0].mxu0
        %v964 = vadd.f32 0.0, %v963
        %v965 = vpop.f32.mrb[0].mxu0
        %v966 = vpop.f32.mrb[0].mxu0
        %v967 = vadd.f32 0.0, %v966
        %v968 = vpop.f32.mrb[0].mxu0
        %969 = vdwg.mxu0
        %971 = vset.pattern.permute.xlu0 0
        %972 = vperm.xlu0 %971, %v790
        %v973 = vpop.permute.xlu0 %972
        %976 = vset.pattern.permute.xlu0 0
        %977 = vperm.xlu0 %976, %v792
        %v978 = vpop.permute.xlu0 %977
        %981 = vset.pattern.permute.xlu0 0
        %982 = vperm.xlu0 %981, %v794
        %v983 = vpop.permute.xlu0 %982
        %986 = vset.pattern.permute.xlu0 0
        %987 = vperm.xlu0 %986, %v796
        %v988 = vpop.permute.xlu0 %987
        %991 = vset.pattern.permute.xlu0 0
        %992 = vperm.xlu0 %991, %v798
        %v993 = vpop.permute.xlu0 %992
        %996 = vset.pattern.permute.xlu0 0
        %997 = vperm.xlu0 %996, %v800
        %v998 = vpop.permute.xlu0 %997
        %1001 = vset.pattern.permute.xlu0 0
        %1002 = vperm.xlu0 %1001, %v802
        %v1003 = vpop.permute.xlu0 %1002
        %1006 = vset.pattern.permute.xlu0 0
        %1007 = vperm.xlu0 %1006, %v804
        %v1008 = vpop.permute.xlu0 %1007
        %v1010 = vmul.f32 %v973, %v673
        %v1011 = vmul.f32 %v978, %v674
        %v1012 = vmul.f32 %v983, %v675
        %v1013 = vmul.f32 %v988, %v676
        %v1014 = vmul.f32 %v993, %v677
        %v1015 = vmul.f32 %v998, %v678
        %v1016 = vmul.f32 %v1003, %v679
        %v1017 = vmul.f32 %v1008, %v680
        %v1018 = vadd.f32 %v1010, %v940
        %v1019 = vadd.f32 %v1011, %v943
        %v1020 = vadd.f32 %v1012, %v948
        %v1021 = vadd.f32 %v1013, %v951
        %v1022 = vadd.f32 %v1014, %v956
        %v1023 = vadd.f32 %v1015, %v959
        %v1024 = vadd.f32 %v1016, %v964
        %v1025 = vadd.f32 %v1017, %v967
        %1026 = vset.pattern.permute.xlu0 1
        %1027 = vperm.xlu0 %1026, %v615
        %v1028 = vpop.permute.xlu0 %1027
        %1030 = vset.pattern.permute.xlu0 1
        %1031 = vperm.xlu0 %1030, %v616
        %v1032 = vpop.permute.xlu0 %1031
        %1034 = vset.pattern.permute.xlu0 1
        %1035 = vperm.xlu0 %1034, %v617
        %v1036 = vpop.permute.xlu0 %1035
        %1038 = vset.pattern.permute.xlu0 1
        %1039 = vperm.xlu0 %1038, %v618
        %v1040 = vpop.permute.xlu0 %1039
        %1042 = vset.pattern.permute.xlu0 1
        %1043 = vperm.xlu0 %1042, %v619
        %v1044 = vpop.permute.xlu0 %1043
        %1046 = vset.pattern.permute.xlu0 1
        %1047 = vperm.xlu0 %1046, %v620
        %v1048 = vpop.permute.xlu0 %1047
        %1050 = vset.pattern.permute.xlu0 1
        %1051 = vperm.xlu0 %1050, %v621
        %v1052 = vpop.permute.xlu0 %1051
        %1054 = vset.pattern.permute.xlu0 1
        %1055 = vperm.xlu0 %1054, %v622
        %v1056 = vpop.permute.xlu0 %1055
        %v1058 = vlaneseq
        %v1059 = vshrl.u32 %v1058, 7
        %v1060 = vsub.s32 1, %v1059
        %v1061 = vrot.slane %v614, %v1060
        %v1062 = vadd.f32 %v1028, %v1061
        %v1063 = vadd.f32 %v1032, %v1061
        %v1064 = vadd.f32 %v1036, %v1061
        %v1065 = vadd.f32 %v1040, %v1061
        %v1066 = vadd.f32 %v1044, %v1061
        %v1067 = vadd.f32 %v1048, %v1061
        %v1068 = vadd.f32 %v1052, %v1061
        %v1069 = vadd.f32 %v1056, %v1061
        %v1070 = vmul.f32 %v1062, 0.01
        %v1071 = vmul.f32 %v1063, 0.01
        %v1072 = vmul.f32 %v1064, 0.01
        %v1073 = vmul.f32 %v1065, 0.01
        %v1074 = vmul.f32 %v1066, 0.01
        %v1075 = vmul.f32 %v1067, 0.01
        %v1076 = vmul.f32 %v1068, 0.01
        %v1077 = vmul.f32 %v1069, 0.01
        %v1078 = vmax.f32 %v1062, %v1070
        %v1079 = vmax.f32 %v1063, %v1071
        %v1080 = vmax.f32 %v1064, %v1072
        %v1081 = vmax.f32 %v1065, %v1073
        %v1082 = vmax.f32 %v1066, %v1074
        %v1083 = vmax.f32 %v1067, %v1075
        %v1084 = vmax.f32 %v1068, %v1076
        %v1085 = vmax.f32 %v1069, %v1077
        %v1086 = vadd.f32 %v1078, %v649
        %v1087 = vadd.f32 %v1079, %v650
        %v1088 = vadd.f32 %v1080, %v651
        %v1089 = vadd.f32 %v1081, %v652
        %v1090 = vadd.f32 %v1082, %v653
        %v1091 = vadd.f32 %v1083, %v654
        %v1092 = vadd.f32 %v1084, %v655
        %v1093 = vadd.f32 %v1085, %v656
        %1094 = vmax.xlane.f32.xlu0 %v1086
        %v1095 = vpop.xlane.xlu0 %1094
        %1096 = vmax.xlane.f32.xlu0 %v1087
        %v1097 = vpop.xlane.xlu0 %1096
        %1098 = vmax.xlane.f32.xlu0 %v1088
        %v1099 = vpop.xlane.xlu0 %1098
        %1100 = vmax.xlane.f32.xlu0 %v1089
        %v1101 = vpop.xlane.xlu0 %1100
        %1102 = vmax.xlane.f32.xlu0 %v1090
        %v1103 = vpop.xlane.xlu0 %1102
        %1104 = vmax.xlane.f32.xlu0 %v1091
        %v1105 = vpop.xlane.xlu0 %1104
        %1106 = vmax.xlane.f32.xlu0 %v1092
        %v1107 = vpop.xlane.xlu0 %1106
        %1108 = vmax.xlane.f32.xlu0 %v1093
        %v1109 = vpop.xlane.xlu0 %1108
        %v1110 = vmax.f32 %v657, %v1095
        %v1111 = vmax.f32 %v658, %v1097
        %v1112 = vmax.f32 %v659, %v1099
        %v1113 = vmax.f32 %v660, %v1101
        %v1114 = vmax.f32 %v661, %v1103
        %v1115 = vmax.f32 %v662, %v1105
        %v1116 = vmax.f32 %v663, %v1107
        %v1117 = vmax.f32 %v664, %v1109
        %v1118 = vsub.f32 %v657, %v1110
        %v1119 = vsub.f32 %v658, %v1111
        %v1120 = vsub.f32 %v659, %v1112
        %v1121 = vsub.f32 %v660, %v1113
        %v1122 = vsub.f32 %v661, %v1114
        %v1123 = vsub.f32 %v662, %v1115
        %v1124 = vsub.f32 %v663, %v1116
        %v1125 = vsub.f32 %v664, %v1117
        %v1126 = vmul.f32 %v1118, 1.442695
        %v1127 = vpow.pop %v1126
        %v1128 = vmul.f32 %v1119, 1.442695
        %v1129 = vpow.pop %v1128
        %v1130 = vmul.f32 %v1120, 1.442695
        %v1131 = vpow.pop %v1130
        %v1132 = vmul.f32 %v1121, 1.442695
        %v1133 = vpow.pop %v1132
        %v1134 = vmul.f32 %v1122, 1.442695
        %v1135 = vpow.pop %v1134
        %v1136 = vmul.f32 %v1123, 1.442695
        %v1137 = vpow.pop %v1136
        %v1138 = vmul.f32 %v1124, 1.442695
        %v1139 = vpow.pop %v1138
        %v1140 = vmul.f32 %v1125, 1.442695
        %v1141 = vpow.pop %v1140
        %1143 = vset.pattern.permute.xlu0 1
        %1144 = vperm.xlu0 %1143, %v1110
        %v1145 = vpop.permute.xlu0 %1144
        %1148 = vset.pattern.permute.xlu0 1
        %1149 = vperm.xlu0 %1148, %v1111
        %v1150 = vpop.permute.xlu0 %1149
        %1153 = vset.pattern.permute.xlu0 1
        %1154 = vperm.xlu0 %1153, %v1112
        %v1155 = vpop.permute.xlu0 %1154
        %1158 = vset.pattern.permute.xlu0 1
        %1159 = vperm.xlu0 %1158, %v1113
        %v1160 = vpop.permute.xlu0 %1159
        %1163 = vset.pattern.permute.xlu0 1
        %1164 = vperm.xlu0 %1163, %v1114
        %v1165 = vpop.permute.xlu0 %1164
        %1168 = vset.pattern.permute.xlu0 1
        %1169 = vperm.xlu0 %1168, %v1115
        %v1170 = vpop.permute.xlu0 %1169
        %1173 = vset.pattern.permute.xlu0 1
        %1174 = vperm.xlu0 %1173, %v1116
        %v1175 = vpop.permute.xlu0 %1174
        %1178 = vset.pattern.permute.xlu0 1
        %1179 = vperm.xlu0 %1178, %v1117
        %v1180 = vpop.permute.xlu0 %1179
        %v1182 = vsub.f32 %v1086, %v1145
        %v1183 = vsub.f32 %v1087, %v1150
        %v1184 = vsub.f32 %v1088, %v1155
        %v1185 = vsub.f32 %v1089, %v1160
        %v1186 = vsub.f32 %v1090, %v1165
        %v1187 = vsub.f32 %v1091, %v1170
        %v1188 = vsub.f32 %v1092, %v1175
        %v1189 = vsub.f32 %v1093, %v1180
        %v1190 = vmul.f32 %v1182, 1.442695
        %v1191 = vpow.pop %v1190
        %v1192 = vmul.f32 %v1183, 1.442695
        %v1193 = vpow.pop %v1192
        %v1194 = vmul.f32 %v1184, 1.442695
        %v1195 = vpow.pop %v1194
        %v1196 = vmul.f32 %v1185, 1.442695
        %v1197 = vpow.pop %v1196
        %v1198 = vmul.f32 %v1186, 1.442695
        %v1199 = vpow.pop %v1198
        %v1200 = vmul.f32 %v1187, 1.442695
        %v1201 = vpow.pop %v1200
        %v1202 = vmul.f32 %v1188, 1.442695
        %v1203 = vpow.pop %v1202
        %v1204 = vmul.f32 %v1189, 1.442695
        %v1205 = vpow.pop %v1204
        %v1206 = vmul.f32 %v1127, %v665
        %v1207 = vmul.f32 %v1129, %v666
        %v1208 = vmul.f32 %v1131, %v667
        %v1209 = vmul.f32 %v1133, %v668
        %v1210 = vmul.f32 %v1135, %v669
        %v1211 = vmul.f32 %v1137, %v670
        %v1212 = vmul.f32 %v1139, %v671
        %v1213 = vmul.f32 %v1141, %v672
        %1214 = vadd.xlane.f32.xlu0 %v1191
        %v1215 = vpop.xlane.xlu0 %1214
        %1216 = vadd.xlane.f32.xlu0 %v1193
        %v1217 = vpop.xlane.xlu0 %1216
        %1218 = vadd.xlane.f32.xlu0 %v1195
        %v1219 = vpop.xlane.xlu0 %1218
        %1220 = vadd.xlane.f32.xlu0 %v1197
        %v1221 = vpop.xlane.xlu0 %1220
        %1222 = vadd.xlane.f32.xlu0 %v1199
        %v1223 = vpop.xlane.xlu0 %1222
        %1224 = vadd.xlane.f32.xlu0 %v1201
        %v1225 = vpop.xlane.xlu0 %1224
        %1226 = vadd.xlane.f32.xlu0 %v1203
        %v1227 = vpop.xlane.xlu0 %1226
        %1228 = vadd.xlane.f32.xlu0 %v1205
        %v1229 = vpop.xlane.xlu0 %1228
        %v1230 = vadd.f32 %v1206, %v1215
        %v1231 = vadd.f32 %v1207, %v1217
        %v1232 = vadd.f32 %v1208, %v1219
        %v1233 = vadd.f32 %v1209, %v1221
        %v1234 = vadd.f32 %v1210, %v1223
        %v1235 = vadd.f32 %v1211, %v1225
        %v1236 = vadd.f32 %v1212, %v1227
        %v1237 = vadd.f32 %v1213, %v1229
        %v1238 = vpack.c.bf16 %v1193, %v1191
        %v1239 = vpack.c.bf16 %v1197, %v1195
        %v1240 = vpack.c.bf16 %v1201, %v1199
        %v1241 = vpack.c.bf16 %v1205, %v1203
        %1250 = vrot.lane.b32.xlu0 %v606, 112
        %v1251 = vpop.permute.xlu0 %1250
        %1252 = vrot.lane.b32.xlu0 %v607, 112
        %v1253 = vpop.permute.xlu0 %1252
        %1254 = vrot.lane.b32.xlu0 %v608, 112
        %v1255 = vpop.permute.xlu0 %1254
        %1256 = vrot.lane.b32.xlu0 %v609, 112
        %v1257 = vpop.permute.xlu0 %1256
        %1258 = vrot.lane.b32.xlu0 %v610, 112
        %v1259 = vpop.permute.xlu0 %1258
        %1260 = vrot.lane.b32.xlu0 %v611, 112
        %v1261 = vpop.permute.xlu0 %1260
        %1262 = vrot.lane.b32.xlu0 %v612, 112
        %v1263 = vpop.permute.xlu0 %1262
        %1264 = vrot.lane.b32.xlu0 %v613, 112
        %v1265 = vpop.permute.xlu0 %1264
        %1274 = vmatprep.subr.bf16.mxu0 0
        %1275 = vmatpush1.bf16.msra.mxu0 %v1251
        %1276 = vmatprep.subr.bf16.mxu0 0
        %1277 = vmatpush1.bf16.msra.mxu0 %v1253
        %1278 = vmatprep.subr.bf16.mxu0 0
        %1279 = vmatpush1.bf16.msra.mxu0 %v1255
        %1280 = vmatprep.subr.bf16.mxu0 0
        %1281 = vmatpush1.bf16.msra.mxu0 %v1257
        %1282 = vmatprep.subr.bf16.mxu0 0
        %1283 = vmatpush1.bf16.msra.mxu0 %v1259
        %1284 = vmatprep.subr.bf16.mxu0 0
        %1285 = vmatpush1.bf16.msra.mxu0 %v1261
        %1286 = vmatprep.subr.bf16.mxu0 0
        %1287 = vmatpush1.bf16.msra.mxu0 %v1263
        %1288 = vmatprep.subr.bf16.mxu0 0
        %1289 = vmatpush1.bf16.msra.mxu0 %v1265
        %1290 = vmatprep.subr.bf16.mxu0 0
        %1291 = vmatpush1.bf16.msra.mxu0 0
        %1292 = vmatprep.subr.bf16.mxu0 0
        %1293 = vmatpush1.bf16.msra.mxu0 0
        %1294 = vmatprep.subr.bf16.mxu0 0
        %1295 = vmatpush1.bf16.msra.mxu0 0
        %1296 = vmatprep.subr.bf16.mxu0 0
        %1297 = vmatpush1.bf16.msra.mxu0 0
        %1298 = vmatprep.subr.bf16.mxu0 0
        %1299 = vmatpush1.bf16.msra.mxu0 0
        %1300 = vmatprep.subr.bf16.mxu0 0
        %1301 = vmatpush1.bf16.msra.mxu0 0
        %1302 = vmatprep.subr.bf16.mxu0 0
        %1303 = vmatpush1.bf16.msra.mxu0 0
        %1304 = vmatprep.subr.bf16.mxu0 0
        %1305 = vmatpush1.bf16.msra.mxu0 0
        %1306 = vmatprep.mubr.bf16.mxu0 0
        %1307 = vmatmul.mubr.bf16.gmra.mrb[0].mxu0 %v1238
        %v1308 = vpop.f32.mrb[0].mxu0
        %v1309 = vadd.f32 0.0, %v1308
        %v1310 = vpop.f32.mrb[0].mxu0
        %v1311 = vpop.f32.mrb[0].mxu0
        %v1312 = vadd.f32 0.0, %v1311
        %v1313 = vpop.f32.mrb[0].mxu0
        %1314 = vmatprep.mubr.bf16.mxu0 0
        %1315 = vmatmul.mubr.bf16.gmra.mrb[0].mxu0 %v1239
        %v1316 = vpop.f32.mrb[0].mxu0
        %v1317 = vadd.f32 0.0, %v1316
        %v1318 = vpop.f32.mrb[0].mxu0
        %v1319 = vpop.f32.mrb[0].mxu0
        %v1320 = vadd.f32 0.0, %v1319
        %v1321 = vpop.f32.mrb[0].mxu0
        %1322 = vmatprep.mubr.bf16.mxu0 0
        %1323 = vmatmul.mubr.bf16.gmra.mrb[0].mxu0 %v1240
        %v1324 = vpop.f32.mrb[0].mxu0
        %v1325 = vadd.f32 0.0, %v1324
        %v1326 = vpop.f32.mrb[0].mxu0
        %v1327 = vpop.f32.mrb[0].mxu0
        %v1328 = vadd.f32 0.0, %v1327
        %v1329 = vpop.f32.mrb[0].mxu0
        %1330 = vmatprep.mubr.bf16.mxu0 0
        %1331 = vmatmul.mubr.bf16.gmra.mrb[0].mxu0 %v1241
        %v1332 = vpop.f32.mrb[0].mxu0
        %v1333 = vadd.f32 0.0, %v1332
        %v1334 = vpop.f32.mrb[0].mxu0
        %v1335 = vpop.f32.mrb[0].mxu0
        %v1336 = vadd.f32 0.0, %v1335
        %v1337 = vpop.f32.mrb[0].mxu0
        %1338 = vdwg.mxu0
        %1340 = vset.pattern.permute.xlu0 1
        %1341 = vperm.xlu0 %1340, %v1127
        %v1342 = vpop.permute.xlu0 %1341
        %1345 = vset.pattern.permute.xlu0 1
        %1346 = vperm.xlu0 %1345, %v1129
        %v1347 = vpop.permute.xlu0 %1346
        %1350 = vset.pattern.permute.xlu0 1
        %1351 = vperm.xlu0 %1350, %v1131
        %v1352 = vpop.permute.xlu0 %1351
        %1355 = vset.pattern.permute.xlu0 1
        %1356 = vperm.xlu0 %1355, %v1133
        %v1357 = vpop.permute.xlu0 %1356
        %1360 = vset.pattern.permute.xlu0 1
        %1361 = vperm.xlu0 %1360, %v1135
        %v1362 = vpop.permute.xlu0 %1361
        %1365 = vset.pattern.permute.xlu0 1
        %1366 = vperm.xlu0 %1365, %v1137
        %v1367 = vpop.permute.xlu0 %1366
        %1370 = vset.pattern.permute.xlu0 1
        %1371 = vperm.xlu0 %1370, %v1139
        %v1372 = vpop.permute.xlu0 %1371
        %1375 = vset.pattern.permute.xlu0 1
        %1376 = vperm.xlu0 %1375, %v1141
        %v1377 = vpop.permute.xlu0 %1376
        %v1379 = vmul.f32 %v1342, %v673
        %v1380 = vmul.f32 %v1347, %v674
        %v1381 = vmul.f32 %v1352, %v675
        %v1382 = vmul.f32 %v1357, %v676
        %v1383 = vmul.f32 %v1362, %v677
        %v1384 = vmul.f32 %v1367, %v678
        %v1385 = vmul.f32 %v1372, %v679
        %v1386 = vmul.f32 %v1377, %v680
        %1395 = vrot.lane.b32.xlu0 %v1309, 16
        %v1396 = vpop.permute.xlu0 %1395
        %1397 = vrot.lane.b32.xlu0 %v1312, 16
        %v1398 = vpop.permute.xlu0 %1397
        %1399 = vrot.lane.b32.xlu0 %v1317, 16
        %v1400 = vpop.permute.xlu0 %1399
        %1401 = vrot.lane.b32.xlu0 %v1320, 16
        %v1402 = vpop.permute.xlu0 %1401
        %1403 = vrot.lane.b32.xlu0 %v1325, 16
        %v1404 = vpop.permute.xlu0 %1403
        %1405 = vrot.lane.b32.xlu0 %v1328, 16
        %v1406 = vpop.permute.xlu0 %1405
        %1407 = vrot.lane.b32.xlu0 %v1333, 16
        %v1408 = vpop.permute.xlu0 %1407
        %1409 = vrot.lane.b32.xlu0 %v1336, 16
        %v1410 = vpop.permute.xlu0 %1409
        %v1419 = vadd.f32 %v1379, %v1396
        %v1420 = vadd.f32 %v1380, %v1398
        %v1421 = vadd.f32 %v1381, %v1400
        %v1422 = vadd.f32 %v1382, %v1402
        %v1423 = vadd.f32 %v1383, %v1404
        %v1424 = vadd.f32 %v1384, %v1406
        %v1425 = vadd.f32 %v1385, %v1408
        %v1426 = vadd.f32 %v1386, %v1410
        %1427 = vset.pattern.permute.xlu0 2
        %1428 = vperm.xlu0 %1427, %v615
        %v1429 = vpop.permute.xlu0 %1428
        %1431 = vset.pattern.permute.xlu0 2
        %1432 = vperm.xlu0 %1431, %v616
        %v1433 = vpop.permute.xlu0 %1432
        %1435 = vset.pattern.permute.xlu0 2
        %1436 = vperm.xlu0 %1435, %v617
        %v1437 = vpop.permute.xlu0 %1436
        %1439 = vset.pattern.permute.xlu0 2
        %1440 = vperm.xlu0 %1439, %v618
        %v1441 = vpop.permute.xlu0 %1440
        %1443 = vset.pattern.permute.xlu0 2
        %1444 = vperm.xlu0 %1443, %v619
        %v1445 = vpop.permute.xlu0 %1444
        %1447 = vset.pattern.permute.xlu0 2
        %1448 = vperm.xlu0 %1447, %v620
        %v1449 = vpop.permute.xlu0 %1448
        %1451 = vset.pattern.permute.xlu0 2
        %1452 = vperm.xlu0 %1451, %v621
        %v1453 = vpop.permute.xlu0 %1452
        %1455 = vset.pattern.permute.xlu0 2
        %1456 = vperm.xlu0 %1455, %v622
        %v1457 = vpop.permute.xlu0 %1456
        %v1459 = vlaneseq
        %v1460 = vshrl.u32 %v1459, 7
        %v1461 = vsub.s32 2, %v1460
        %v1462 = vrot.slane %v614, %v1461
        %v1463 = vadd.f32 %v1429, %v1462
        %v1464 = vadd.f32 %v1433, %v1462
        %v1465 = vadd.f32 %v1437, %v1462
        %v1466 = vadd.f32 %v1441, %v1462
        %v1467 = vadd.f32 %v1445, %v1462
        %v1468 = vadd.f32 %v1449, %v1462
        %v1469 = vadd.f32 %v1453, %v1462
        %v1470 = vadd.f32 %v1457, %v1462
        %v1471 = vmul.f32 %v1463, 0.01
        %v1472 = vmul.f32 %v1464, 0.01
        %v1473 = vmul.f32 %v1465, 0.01
        %v1474 = vmul.f32 %v1466, 0.01
        %v1475 = vmul.f32 %v1467, 0.01
        %v1476 = vmul.f32 %v1468, 0.01
        %v1477 = vmul.f32 %v1469, 0.01
        %v1478 = vmul.f32 %v1470, 0.01
        %v1479 = vmax.f32 %v1463, %v1471
        %v1480 = vmax.f32 %v1464, %v1472
        %v1481 = vmax.f32 %v1465, %v1473
        %v1482 = vmax.f32 %v1466, %v1474
        %v1483 = vmax.f32 %v1467, %v1475
        %v1484 = vmax.f32 %v1468, %v1476
        %v1485 = vmax.f32 %v1469, %v1477
        %v1486 = vmax.f32 %v1470, %v1478
        %v1487 = vadd.f32 %v1479, %v649
        %v1488 = vadd.f32 %v1480, %v650
        %v1489 = vadd.f32 %v1481, %v651
        %v1490 = vadd.f32 %v1482, %v652
        %v1491 = vadd.f32 %v1483, %v653
        %v1492 = vadd.f32 %v1484, %v654
        %v1493 = vadd.f32 %v1485, %v655
        %v1494 = vadd.f32 %v1486, %v656
        %1495 = vmax.xlane.f32.xlu0 %v1487
        %v1496 = vpop.xlane.xlu0 %1495
        %1497 = vmax.xlane.f32.xlu0 %v1488
        %v1498 = vpop.xlane.xlu0 %1497
        %1499 = vmax.xlane.f32.xlu0 %v1489
        %v1500 = vpop.xlane.xlu0 %1499
        %1501 = vmax.xlane.f32.xlu0 %v1490
        %v1502 = vpop.xlane.xlu0 %1501
        %1503 = vmax.xlane.f32.xlu0 %v1491
        %v1504 = vpop.xlane.xlu0 %1503
        %1505 = vmax.xlane.f32.xlu0 %v1492
        %v1506 = vpop.xlane.xlu0 %1505
        %1507 = vmax.xlane.f32.xlu0 %v1493
        %v1508 = vpop.xlane.xlu0 %1507
        %1509 = vmax.xlane.f32.xlu0 %v1494
        %v1510 = vpop.xlane.xlu0 %1509
        %v1511 = vmax.f32 %v657, %v1496
        %v1512 = vmax.f32 %v658, %v1498
        %v1513 = vmax.f32 %v659, %v1500
        %v1514 = vmax.f32 %v660, %v1502
        %v1515 = vmax.f32 %v661, %v1504
        %v1516 = vmax.f32 %v662, %v1506
        %v1517 = vmax.f32 %v663, %v1508
        %v1518 = vmax.f32 %v664, %v1510
        %v1519 = vsub.f32 %v657, %v1511
        %v1520 = vsub.f32 %v658, %v1512
        %v1521 = vsub.f32 %v659, %v1513
        %v1522 = vsub.f32 %v660, %v1514
        %v1523 = vsub.f32 %v661, %v1515
        %v1524 = vsub.f32 %v662, %v1516
        %v1525 = vsub.f32 %v663, %v1517
        %v1526 = vsub.f32 %v664, %v1518
        %v1527 = vmul.f32 %v1519, 1.442695
        %v1528 = vpow.pop %v1527
        %v1529 = vmul.f32 %v1520, 1.442695
        %v1530 = vpow.pop %v1529
        %v1531 = vmul.f32 %v1521, 1.442695
        %v1532 = vpow.pop %v1531
        %v1533 = vmul.f32 %v1522, 1.442695
        %v1534 = vpow.pop %v1533
        %v1535 = vmul.f32 %v1523, 1.442695
        %v1536 = vpow.pop %v1535
        %v1537 = vmul.f32 %v1524, 1.442695
        %v1538 = vpow.pop %v1537
        %v1539 = vmul.f32 %v1525, 1.442695
        %v1540 = vpow.pop %v1539
        %v1541 = vmul.f32 %v1526, 1.442695
        %v1542 = vpow.pop %v1541
        %1544 = vset.pattern.permute.xlu0 2
        %1545 = vperm.xlu0 %1544, %v1511
        %v1546 = vpop.permute.xlu0 %1545
        %1549 = vset.pattern.permute.xlu0 2
        %1550 = vperm.xlu0 %1549, %v1512
        %v1551 = vpop.permute.xlu0 %1550
        %1554 = vset.pattern.permute.xlu0 2
        %1555 = vperm.xlu0 %1554, %v1513
        %v1556 = vpop.permute.xlu0 %1555
        %1559 = vset.pattern.permute.xlu0 2
        %1560 = vperm.xlu0 %1559, %v1514
        %v1561 = vpop.permute.xlu0 %1560
        %1564 = vset.pattern.permute.xlu0 2
        %1565 = vperm.xlu0 %1564, %v1515
        %v1566 = vpop.permute.xlu0 %1565
        %1569 = vset.pattern.permute.xlu0 2
        %1570 = vperm.xlu0 %1569, %v1516
        %v1571 = vpop.permute.xlu0 %1570
        %1574 = vset.pattern.permute.xlu0 2
        %1575 = vperm.xlu0 %1574, %v1517
        %v1576 = vpop.permute.xlu0 %1575
        %1579 = vset.pattern.permute.xlu0 2
        %1580 = vperm.xlu0 %1579, %v1518
        %v1581 = vpop.permute.xlu0 %1580
        %v1583 = vsub.f32 %v1487, %v1546
        %v1584 = vsub.f32 %v1488, %v1551
        %v1585 = vsub.f32 %v1489, %v1556
        %v1586 = vsub.f32 %v1490, %v1561
        %v1587 = vsub.f32 %v1491, %v1566
        %v1588 = vsub.f32 %v1492, %v1571
        %v1589 = vsub.f32 %v1493, %v1576
        %v1590 = vsub.f32 %v1494, %v1581
        %v1591 = vmul.f32 %v1583, 1.442695
        %v1592 = vpow.pop %v1591
        %v1593 = vmul.f32 %v1584, 1.442695
        %v1594 = vpow.pop %v1593
        %v1595 = vmul.f32 %v1585, 1.442695
        %v1596 = vpow.pop %v1595
        %v1597 = vmul.f32 %v1586, 1.442695
        %v1598 = vpow.pop %v1597
        %v1599 = vmul.f32 %v1587, 1.442695
        %v1600 = vpow.pop %v1599
        %v1601 = vmul.f32 %v1588, 1.442695
        %v1602 = vpow.pop %v1601
        %v1603 = vmul.f32 %v1589, 1.442695
        %v1604 = vpow.pop %v1603
        %v1605 = vmul.f32 %v1590, 1.442695
        %v1606 = vpow.pop %v1605
        %v1607 = vmul.f32 %v1528, %v665
        %v1608 = vmul.f32 %v1530, %v666
        %v1609 = vmul.f32 %v1532, %v667
        %v1610 = vmul.f32 %v1534, %v668
        %v1611 = vmul.f32 %v1536, %v669
        %v1612 = vmul.f32 %v1538, %v670
        %v1613 = vmul.f32 %v1540, %v671
        %v1614 = vmul.f32 %v1542, %v672
        %1615 = vadd.xlane.f32.xlu0 %v1592
        %v1616 = vpop.xlane.xlu0 %1615
        %1617 = vadd.xlane.f32.xlu0 %v1594
        %v1618 = vpop.xlane.xlu0 %1617
        %1619 = vadd.xlane.f32.xlu0 %v1596
        %v1620 = vpop.xlane.xlu0 %1619
        %1621 = vadd.xlane.f32.xlu0 %v1598
        %v1622 = vpop.xlane.xlu0 %1621
        %1623 = vadd.xlane.f32.xlu0 %v1600
        %v1624 = vpop.xlane.xlu0 %1623
        %1625 = vadd.xlane.f32.xlu0 %v1602
        %v1626 = vpop.xlane.xlu0 %1625
        %1627 = vadd.xlane.f32.xlu0 %v1604
        %v1628 = vpop.xlane.xlu0 %1627
        %1629 = vadd.xlane.f32.xlu0 %v1606
        %v1630 = vpop.xlane.xlu0 %1629
        %v1631 = vadd.f32 %v1607, %v1616
        %v1632 = vadd.f32 %v1608, %v1618
        %v1633 = vadd.f32 %v1609, %v1620
        %v1634 = vadd.f32 %v1610, %v1622
        %v1635 = vadd.f32 %v1611, %v1624
        %v1636 = vadd.f32 %v1612, %v1626
        %v1637 = vadd.f32 %v1613, %v1628
        %v1638 = vadd.f32 %v1614, %v1630
        %v1639 = vpack.c.bf16 %v1594, %v1592
        %v1640 = vpack.c.bf16 %v1598, %v1596
        %v1641 = vpack.c.bf16 %v1602, %v1600
        %v1642 = vpack.c.bf16 %v1606, %v1604
        %1643 = vrot.lane.b32.xlu0 %v606, 96
        %v1644 = vpop.permute.xlu0 %1643
        %1645 = vrot.lane.b32.xlu0 %v607, 96
        %v1646 = vpop.permute.xlu0 %1645
        %1647 = vrot.lane.b32.xlu0 %v608, 96
        %v1648 = vpop.permute.xlu0 %1647
        %1649 = vrot.lane.b32.xlu0 %v609, 96
        %v1650 = vpop.permute.xlu0 %1649
        %1651 = vrot.lane.b32.xlu0 %v610, 96
        %v1652 = vpop.permute.xlu0 %1651
        %1653 = vrot.lane.b32.xlu0 %v611, 96
        %v1654 = vpop.permute.xlu0 %1653
        %1655 = vrot.lane.b32.xlu0 %v612, 96
        %v1656 = vpop.permute.xlu0 %1655
        %1657 = vrot.lane.b32.xlu0 %v613, 96
        %v1658 = vpop.permute.xlu0 %1657
        %1667 = vmatprep.subr.bf16.mxu0 0
        %1668 = vmatpush1.bf16.msra.mxu0 %v1644
        %1669 = vmatprep.subr.bf16.mxu0 0
        %1670 = vmatpush1.bf16.msra.mxu0 %v1646
        %1671 = vmatprep.subr.bf16.mxu0 0
        %1672 = vmatpush1.bf16.msra.mxu0 %v1648
        %1673 = vmatprep.subr.bf16.mxu0 0
        %1674 = vmatpush1.bf16.msra.mxu0 %v1650
        %1675 = vmatprep.subr.bf16.mxu0 0
        %1676 = vmatpush1.bf16.msra.mxu0 %v1652
        %1677 = vmatprep.subr.bf16.mxu0 0
        %1678 = vmatpush1.bf16.msra.mxu0 %v1654
        %1679 = vmatprep.subr.bf16.mxu0 0
        %1680 = vmatpush1.bf16.msra.mxu0 %v1656
        %1681 = vmatprep.subr.bf16.mxu0 0
        %1682 = vmatpush1.bf16.msra.mxu0 %v1658
        %1683 = vmatprep.subr.bf16.mxu0 0
        %1684 = vmatpush1.bf16.msra.mxu0 0
        %1685 = vmatprep.subr.bf16.mxu0 0
        %1686 = vmatpush1.bf16.msra.mxu0 0
        %1687 = vmatprep.subr.bf16.mxu0 0
        %1688 = vmatpush1.bf16.msra.mxu0 0
        %1689 = vmatprep.subr.bf16.mxu0 0
        %1690 = vmatpush1.bf16.msra.mxu0 0
        %1691 = vmatprep.subr.bf16.mxu0 0
        %1692 = vmatpush1.bf16.msra.mxu0 0
        %1693 = vmatprep.subr.bf16.mxu0 0
        %1694 = vmatpush1.bf16.msra.mxu0 0
        %1695 = vmatprep.subr.bf16.mxu0 0
        %1696 = vmatpush1.bf16.msra.mxu0 0
        %1697 = vmatprep.subr.bf16.mxu0 0
        %1698 = vmatpush1.bf16.msra.mxu0 0
        %1699 = vmatprep.mubr.bf16.mxu0 0
        %1700 = vmatmul.mubr.bf16.gmra.mrb[0].mxu0 %v1639
        %v1701 = vpop.f32.mrb[0].mxu0
        %v1702 = vadd.f32 0.0, %v1701
        %v1703 = vpop.f32.mrb[0].mxu0
        %v1704 = vpop.f32.mrb[0].mxu0
        %v1705 = vadd.f32 0.0, %v1704
        %v1706 = vpop.f32.mrb[0].mxu0
        %1707 = vmatprep.mubr.bf16.mxu0 0
        %1708 = vmatmul.mubr.bf16.gmra.mrb[0].mxu0 %v1640
        %v1709 = vpop.f32.mrb[0].mxu0
        %v1710 = vadd.f32 0.0, %v1709
        %v1711 = vpop.f32.mrb[0].mxu0
        %v1712 = vpop.f32.mrb[0].mxu0
        %v1713 = vadd.f32 0.0, %v1712
        %v1714 = vpop.f32.mrb[0].mxu0
        %1715 = vmatprep.mubr.bf16.mxu0 0
        %1716 = vmatmul.mubr.bf16.gmra.mrb[0].mxu0 %v1641
        %v1717 = vpop.f32.mrb[0].mxu0
        %v1718 = vadd.f32 0.0, %v1717
        %v1719 = vpop.f32.mrb[0].mxu0
        %v1720 = vpop.f32.mrb[0].mxu0
        %v1721 = vadd.f32 0.0, %v1720
        %v1722 = vpop.f32.mrb[0].mxu0
        %1723 = vmatprep.mubr.bf16.mxu0 0
        %1724 = vmatmul.mubr.bf16.gmra.mrb[0].mxu0 %v1642
        %v1725 = vpop.f32.mrb[0].mxu0
        %v1726 = vadd.f32 0.0, %v1725
        %v1727 = vpop.f32.mrb[0].mxu0
        %v1728 = vpop.f32.mrb[0].mxu0
        %v1729 = vadd.f32 0.0, %v1728
        %v1730 = vpop.f32.mrb[0].mxu0
        %1731 = vdwg.mxu0
        %1733 = vset.pattern.permute.xlu0 2
        %1734 = vperm.xlu0 %1733, %v1528
        %v1735 = vpop.permute.xlu0 %1734
        %1738 = vset.pattern.permute.xlu0 2
        %1739 = vperm.xlu0 %1738, %v1530
        %v1740 = vpop.permute.xlu0 %1739
        %1743 = vset.pattern.permute.xlu0 2
        %1744 = vperm.xlu0 %1743, %v1532
        %v1745 = vpop.permute.xlu0 %1744
        %1748 = vset.pattern.permute.xlu0 2
        %1749 = vperm.xlu0 %1748, %v1534
        %v1750 = vpop.permute.xlu0 %1749
        %1753 = vset.pattern.permute.xlu0 2
        %1754 = vperm.xlu0 %1753, %v1536
        %v1755 = vpop.permute.xlu0 %1754
        %1758 = vset.pattern.permute.xlu0 2
        %1759 = vperm.xlu0 %1758, %v1538
        %v1760 = vpop.permute.xlu0 %1759
        %1763 = vset.pattern.permute.xlu0 2
        %1764 = vperm.xlu0 %1763, %v1540
        %v1765 = vpop.permute.xlu0 %1764
        %1768 = vset.pattern.permute.xlu0 2
        %1769 = vperm.xlu0 %1768, %v1542
        %v1770 = vpop.permute.xlu0 %1769
        %v1772 = vmul.f32 %v1735, %v673
        %v1773 = vmul.f32 %v1740, %v674
        %v1774 = vmul.f32 %v1745, %v675
        %v1775 = vmul.f32 %v1750, %v676
        %v1776 = vmul.f32 %v1755, %v677
        %v1777 = vmul.f32 %v1760, %v678
        %v1778 = vmul.f32 %v1765, %v679
        %v1779 = vmul.f32 %v1770, %v680
        %1788 = vrot.lane.b32.xlu0 %v1702, 32
        %v1789 = vpop.permute.xlu0 %1788
        %1790 = vrot.lane.b32.xlu0 %v1705, 32
        %v1791 = vpop.permute.xlu0 %1790
        %1792 = vrot.lane.b32.xlu0 %v1710, 32
        %v1793 = vpop.permute.xlu0 %1792
        %1794 = vrot.lane.b32.xlu0 %v1713, 32
        %v1795 = vpop.permute.xlu0 %1794
        %1796 = vrot.lane.b32.xlu0 %v1718, 32
        %v1797 = vpop.permute.xlu0 %1796
        %1798 = vrot.lane.b32.xlu0 %v1721, 32
        %v1799 = vpop.permute.xlu0 %1798
        %1800 = vrot.lane.b32.xlu0 %v1726, 32
        %v1801 = vpop.permute.xlu0 %1800
        %1802 = vrot.lane.b32.xlu0 %v1729, 32
        %v1803 = vpop.permute.xlu0 %1802
        %v1812 = vadd.f32 %v1772, %v1789
        %v1813 = vadd.f32 %v1773, %v1791
        %v1814 = vadd.f32 %v1774, %v1793
        %v1815 = vadd.f32 %v1775, %v1795
        %v1816 = vadd.f32 %v1776, %v1797
        %v1817 = vadd.f32 %v1777, %v1799
        %v1818 = vadd.f32 %v1778, %v1801
        %v1819 = vadd.f32 %v1779, %v1803
        %1820 = vset.pattern.permute.xlu0 3
        %1821 = vperm.xlu0 %1820, %v615
        %v1822 = vpop.permute.xlu0 %1821
        %1824 = vset.pattern.permute.xlu0 3
        %1825 = vperm.xlu0 %1824, %v616
        %v1826 = vpop.permute.xlu0 %1825
        %1828 = vset.pattern.permute.xlu0 3
        %1829 = vperm.xlu0 %1828, %v617
        %v1830 = vpop.permute.xlu0 %1829
        %1832 = vset.pattern.permute.xlu0 3
        %1833 = vperm.xlu0 %1832, %v618
        %v1834 = vpop.permute.xlu0 %1833
        %1836 = vset.pattern.permute.xlu0 3
        %1837 = vperm.xlu0 %1836, %v619
        %v1838 = vpop.permute.xlu0 %1837
        %1840 = vset.pattern.permute.xlu0 3
        %1841 = vperm.xlu0 %1840, %v620
        %v1842 = vpop.permute.xlu0 %1841
        %1844 = vset.pattern.permute.xlu0 3
        %1845 = vperm.xlu0 %1844, %v621
        %v1846 = vpop.permute.xlu0 %1845
        %1848 = vset.pattern.permute.xlu0 3
        %1849 = vperm.xlu0 %1848, %v622
        %v1850 = vpop.permute.xlu0 %1849
        %v1852 = vlaneseq
        %v1853 = vshrl.u32 %v1852, 7
        %v1854 = vsub.s32 3, %v1853
        %v1855 = vrot.slane %v614, %v1854
        %v1856 = vadd.f32 %v1822, %v1855
        %v1857 = vadd.f32 %v1826, %v1855
        %v1858 = vadd.f32 %v1830, %v1855
        %v1859 = vadd.f32 %v1834, %v1855
        %v1860 = vadd.f32 %v1838, %v1855
        %v1861 = vadd.f32 %v1842, %v1855
        %v1862 = vadd.f32 %v1846, %v1855
        %v1863 = vadd.f32 %v1850, %v1855
        %v1864 = vmul.f32 %v1856, 0.01
        %v1865 = vmul.f32 %v1857, 0.01
        %v1866 = vmul.f32 %v1858, 0.01
        %v1867 = vmul.f32 %v1859, 0.01
        %v1868 = vmul.f32 %v1860, 0.01
        %v1869 = vmul.f32 %v1861, 0.01
        %v1870 = vmul.f32 %v1862, 0.01
        %v1871 = vmul.f32 %v1863, 0.01
        %v1872 = vmax.f32 %v1856, %v1864
        %v1873 = vmax.f32 %v1857, %v1865
        %v1874 = vmax.f32 %v1858, %v1866
        %v1875 = vmax.f32 %v1859, %v1867
        %v1876 = vmax.f32 %v1860, %v1868
        %v1877 = vmax.f32 %v1861, %v1869
        %v1878 = vmax.f32 %v1862, %v1870
        %v1879 = vmax.f32 %v1863, %v1871
        %v1880 = vadd.f32 %v1872, %v649
        %v1881 = vadd.f32 %v1873, %v650
        %v1882 = vadd.f32 %v1874, %v651
        %v1883 = vadd.f32 %v1875, %v652
        %v1884 = vadd.f32 %v1876, %v653
        %v1885 = vadd.f32 %v1877, %v654
        %v1886 = vadd.f32 %v1878, %v655
        %v1887 = vadd.f32 %v1879, %v656
        %1888 = vmax.xlane.f32.xlu0 %v1880
        %v1889 = vpop.xlane.xlu0 %1888
        %1890 = vmax.xlane.f32.xlu0 %v1881
        %v1891 = vpop.xlane.xlu0 %1890
        %1892 = vmax.xlane.f32.xlu0 %v1882
        %v1893 = vpop.xlane.xlu0 %1892
        %1894 = vmax.xlane.f32.xlu0 %v1883
        %v1895 = vpop.xlane.xlu0 %1894
        %1896 = vmax.xlane.f32.xlu0 %v1884
        %v1897 = vpop.xlane.xlu0 %1896
        %1898 = vmax.xlane.f32.xlu0 %v1885
        %v1899 = vpop.xlane.xlu0 %1898
        %1900 = vmax.xlane.f32.xlu0 %v1886
        %v1901 = vpop.xlane.xlu0 %1900
        %1902 = vmax.xlane.f32.xlu0 %v1887
        %v1903 = vpop.xlane.xlu0 %1902
        %v1904 = vmax.f32 %v657, %v1889
        %v1905 = vmax.f32 %v658, %v1891
        %v1906 = vmax.f32 %v659, %v1893
        %v1907 = vmax.f32 %v660, %v1895
        %v1908 = vmax.f32 %v661, %v1897
        %v1909 = vmax.f32 %v662, %v1899
        %v1910 = vmax.f32 %v663, %v1901
        %v1911 = vmax.f32 %v664, %v1903
        %v1912 = vsub.f32 %v657, %v1904
        %v1913 = vsub.f32 %v658, %v1905
        %v1914 = vsub.f32 %v659, %v1906
        %v1915 = vsub.f32 %v660, %v1907
        %v1916 = vsub.f32 %v661, %v1908
        %v1917 = vsub.f32 %v662, %v1909
        %v1918 = vsub.f32 %v663, %v1910
        %v1919 = vsub.f32 %v664, %v1911
        %v1920 = vmul.f32 %v1912, 1.442695
        %v1921 = vpow.pop %v1920
        %v1922 = vmul.f32 %v1913, 1.442695
        %v1923 = vpow.pop %v1922
        %v1924 = vmul.f32 %v1914, 1.442695
        %v1925 = vpow.pop %v1924
        %v1926 = vmul.f32 %v1915, 1.442695
        %v1927 = vpow.pop %v1926
        %v1928 = vmul.f32 %v1916, 1.442695
        %v1929 = vpow.pop %v1928
        %v1930 = vmul.f32 %v1917, 1.442695
        %v1931 = vpow.pop %v1930
        %v1932 = vmul.f32 %v1918, 1.442695
        %v1933 = vpow.pop %v1932
        %v1934 = vmul.f32 %v1919, 1.442695
        %v1935 = vpow.pop %v1934
        %1937 = vset.pattern.permute.xlu0 3
        %1938 = vperm.xlu0 %1937, %v1904
        %v1939 = vpop.permute.xlu0 %1938
        %1942 = vset.pattern.permute.xlu0 3
        %1943 = vperm.xlu0 %1942, %v1905
        %v1944 = vpop.permute.xlu0 %1943
        %1947 = vset.pattern.permute.xlu0 3
        %1948 = vperm.xlu0 %1947, %v1906
        %v1949 = vpop.permute.xlu0 %1948
        %1952 = vset.pattern.permute.xlu0 3
        %1953 = vperm.xlu0 %1952, %v1907
        %v1954 = vpop.permute.xlu0 %1953
        %1957 = vset.pattern.permute.xlu0 3
        %1958 = vperm.xlu0 %1957, %v1908
        %v1959 = vpop.permute.xlu0 %1958
        %1962 = vset.pattern.permute.xlu0 3
        %1963 = vperm.xlu0 %1962, %v1909
        %v1964 = vpop.permute.xlu0 %1963
        %1967 = vset.pattern.permute.xlu0 3
        %1968 = vperm.xlu0 %1967, %v1910
        %v1969 = vpop.permute.xlu0 %1968
        %1972 = vset.pattern.permute.xlu0 3
        %1973 = vperm.xlu0 %1972, %v1911
        %v1974 = vpop.permute.xlu0 %1973
        %v1976 = vsub.f32 %v1880, %v1939
        %v1977 = vsub.f32 %v1881, %v1944
        %v1978 = vsub.f32 %v1882, %v1949
        %v1979 = vsub.f32 %v1883, %v1954
        %v1980 = vsub.f32 %v1884, %v1959
        %v1981 = vsub.f32 %v1885, %v1964
        %v1982 = vsub.f32 %v1886, %v1969
        %v1983 = vsub.f32 %v1887, %v1974
        %v1984 = vmul.f32 %v1976, 1.442695
        %v1985 = vpow.pop %v1984
        %v1986 = vmul.f32 %v1977, 1.442695
        %v1987 = vpow.pop %v1986
        %v1988 = vmul.f32 %v1978, 1.442695
        %v1989 = vpow.pop %v1988
        %v1990 = vmul.f32 %v1979, 1.442695
        %v1991 = vpow.pop %v1990
        %v1992 = vmul.f32 %v1980, 1.442695
        %v1993 = vpow.pop %v1992
        %v1994 = vmul.f32 %v1981, 1.442695
        %v1995 = vpow.pop %v1994
        %v1996 = vmul.f32 %v1982, 1.442695
        %v1997 = vpow.pop %v1996
        %v1998 = vmul.f32 %v1983, 1.442695
        %v1999 = vpow.pop %v1998
        %v2000 = vmul.f32 %v1921, %v665
        %v2001 = vmul.f32 %v1923, %v666
        %v2002 = vmul.f32 %v1925, %v667
        %v2003 = vmul.f32 %v1927, %v668
        %v2004 = vmul.f32 %v1929, %v669
        %v2005 = vmul.f32 %v1931, %v670
        %v2006 = vmul.f32 %v1933, %v671
        %v2007 = vmul.f32 %v1935, %v672
        %2008 = vadd.xlane.f32.xlu0 %v1985
        %v2009 = vpop.xlane.xlu0 %2008
        %2010 = vadd.xlane.f32.xlu0 %v1987
        %v2011 = vpop.xlane.xlu0 %2010
        %2012 = vadd.xlane.f32.xlu0 %v1989
        %v2013 = vpop.xlane.xlu0 %2012
        %2014 = vadd.xlane.f32.xlu0 %v1991
        %v2015 = vpop.xlane.xlu0 %2014
        %2016 = vadd.xlane.f32.xlu0 %v1993
        %v2017 = vpop.xlane.xlu0 %2016
        %2018 = vadd.xlane.f32.xlu0 %v1995
        %v2019 = vpop.xlane.xlu0 %2018
        %2020 = vadd.xlane.f32.xlu0 %v1997
        %v2021 = vpop.xlane.xlu0 %2020
        %2022 = vadd.xlane.f32.xlu0 %v1999
        %v2023 = vpop.xlane.xlu0 %2022
        %v2024 = vadd.f32 %v2000, %v2009
        %v2025 = vadd.f32 %v2001, %v2011
        %v2026 = vadd.f32 %v2002, %v2013
        %v2027 = vadd.f32 %v2003, %v2015
        %v2028 = vadd.f32 %v2004, %v2017
        %v2029 = vadd.f32 %v2005, %v2019
        %v2030 = vadd.f32 %v2006, %v2021
        %v2031 = vadd.f32 %v2007, %v2023
        %v2032 = vpack.c.bf16 %v1987, %v1985
        %v2033 = vpack.c.bf16 %v1991, %v1989
        %v2034 = vpack.c.bf16 %v1995, %v1993
        %v2035 = vpack.c.bf16 %v1999, %v1997
        %2036 = vrot.lane.b32.xlu0 %v606, 80
        %v2037 = vpop.permute.xlu0 %2036
        %2038 = vrot.lane.b32.xlu0 %v607, 80
        %v2039 = vpop.permute.xlu0 %2038
        %2040 = vrot.lane.b32.xlu0 %v608, 80
        %v2041 = vpop.permute.xlu0 %2040
        %2042 = vrot.lane.b32.xlu0 %v609, 80
        %v2043 = vpop.permute.xlu0 %2042
        %2044 = vrot.lane.b32.xlu0 %v610, 80
        %v2045 = vpop.permute.xlu0 %2044
        %2046 = vrot.lane.b32.xlu0 %v611, 80
        %v2047 = vpop.permute.xlu0 %2046
        %2048 = vrot.lane.b32.xlu0 %v612, 80
        %v2049 = vpop.permute.xlu0 %2048
        %2050 = vrot.lane.b32.xlu0 %v613, 80
        %v2051 = vpop.permute.xlu0 %2050
        %2060 = vmatprep.subr.bf16.mxu0 0
        %2061 = vmatpush1.bf16.msra.mxu0 %v2037
        %2062 = vmatprep.subr.bf16.mxu0 0
        %2063 = vmatpush1.bf16.msra.mxu0 %v2039
        %2064 = vmatprep.subr.bf16.mxu0 0
        %2065 = vmatpush1.bf16.msra.mxu0 %v2041
        %2066 = vmatprep.subr.bf16.mxu0 0
        %2067 = vmatpush1.bf16.msra.mxu0 %v2043
        %2068 = vmatprep.subr.bf16.mxu0 0
        %2069 = vmatpush1.bf16.msra.mxu0 %v2045
        %2070 = vmatprep.subr.bf16.mxu0 0
        %2071 = vmatpush1.bf16.msra.mxu0 %v2047
        %2072 = vmatprep.subr.bf16.mxu0 0
        %2073 = vmatpush1.bf16.msra.mxu0 %v2049
        %2074 = vmatprep.subr.bf16.mxu0 0
        %2075 = vmatpush1.bf16.msra.mxu0 %v2051
        %2076 = vmatprep.subr.bf16.mxu0 0
        %2077 = vmatpush1.bf16.msra.mxu0 0
        %2078 = vmatprep.subr.bf16.mxu0 0
        %2079 = vmatpush1.bf16.msra.mxu0 0
        %2080 = vmatprep.subr.bf16.mxu0 0
        %2081 = vmatpush1.bf16.msra.mxu0 0
        %2082 = vmatprep.subr.bf16.mxu0 0
        %2083 = vmatpush1.bf16.msra.mxu0 0
        %2084 = vmatprep.subr.bf16.mxu0 0
        %2085 = vmatpush1.bf16.msra.mxu0 0
        %2086 = vmatprep.subr.bf16.mxu0 0
        %2087 = vmatpush1.bf16.msra.mxu0 0
        %2088 = vmatprep.subr.bf16.mxu0 0
        %2089 = vmatpush1.bf16.msra.mxu0 0
        %2090 = vmatprep.subr.bf16.mxu0 0
        %2091 = vmatpush1.bf16.msra.mxu0 0
        %2092 = vmatprep.mubr.bf16.mxu0 0
        %2093 = vmatmul.mubr.bf16.gmra.mrb[0].mxu0 %v2032
        %v2094 = vpop.f32.mrb[0].mxu0
        %v2095 = vadd.f32 0.0, %v2094
        %v2096 = vpop.f32.mrb[0].mxu0
        %v2097 = vpop.f32.mrb[0].mxu0
        %v2098 = vadd.f32 0.0, %v2097
        %v2099 = vpop.f32.mrb[0].mxu0
        %2100 = vmatprep.mubr.bf16.mxu0 0
        %2101 = vmatmul.mubr.bf16.gmra.mrb[0].mxu0 %v2033
        %v2102 = vpop.f32.mrb[0].mxu0
        %v2103 = vadd.f32 0.0, %v2102
        %v2104 = vpop.f32.mrb[0].mxu0
        %v2105 = vpop.f32.mrb[0].mxu0
        %v2106 = vadd.f32 0.0, %v2105
        %v2107 = vpop.f32.mrb[0].mxu0
        %2108 = vmatprep.mubr.bf16.mxu0 0
        %2109 = vmatmul.mubr.bf16.gmra.mrb[0].mxu0 %v2034
        %v2110 = vpop.f32.mrb[0].mxu0
        %v2111 = vadd.f32 0.0, %v2110
        %v2112 = vpop.f32.mrb[0].mxu0
        %v2113 = vpop.f32.mrb[0].mxu0
        %v2114 = vadd.f32 0.0, %v2113
        %v2115 = vpop.f32.mrb[0].mxu0
        %2116 = vmatprep.mubr.bf16.mxu0 0
        %2117 = vmatmul.mubr.bf16.gmra.mrb[0].mxu0 %v2035
        %v2118 = vpop.f32.mrb[0].mxu0
        %v2119 = vadd.f32 0.0, %v2118
        %v2120 = vpop.f32.mrb[0].mxu0
        %v2121 = vpop.f32.mrb[0].mxu0
        %v2122 = vadd.f32 0.0, %v2121
        %v2123 = vpop.f32.mrb[0].mxu0
        %2124 = vdwg.mxu0
        %2126 = vset.pattern.permute.xlu0 3
        %2127 = vperm.xlu0 %2126, %v1921
        %v2128 = vpop.permute.xlu0 %2127
        %2131 = vset.pattern.permute.xlu0 3
        %2132 = vperm.xlu0 %2131, %v1923
        %v2133 = vpop.permute.xlu0 %2132
        %2136 = vset.pattern.permute.xlu0 3
        %2137 = vperm.xlu0 %2136, %v1925
        %v2138 = vpop.permute.xlu0 %2137
        %2141 = vset.pattern.permute.xlu0 3
        %2142 = vperm.xlu0 %2141, %v1927
        %v2143 = vpop.permute.xlu0 %2142
        %2146 = vset.pattern.permute.xlu0 3
        %2147 = vperm.xlu0 %2146, %v1929
        %v2148 = vpop.permute.xlu0 %2147
        %2151 = vset.pattern.permute.xlu0 3
        %2152 = vperm.xlu0 %2151, %v1931
        %v2153 = vpop.permute.xlu0 %2152
        %2156 = vset.pattern.permute.xlu0 3
        %2157 = vperm.xlu0 %2156, %v1933
        %v2158 = vpop.permute.xlu0 %2157
        %2161 = vset.pattern.permute.xlu0 3
        %2162 = vperm.xlu0 %2161, %v1935
        %v2163 = vpop.permute.xlu0 %2162
        %v2165 = vmul.f32 %v2128, %v673
        %v2166 = vmul.f32 %v2133, %v674
        %v2167 = vmul.f32 %v2138, %v675
        %v2168 = vmul.f32 %v2143, %v676
        %v2169 = vmul.f32 %v2148, %v677
        %v2170 = vmul.f32 %v2153, %v678
        %v2171 = vmul.f32 %v2158, %v679
        %v2172 = vmul.f32 %v2163, %v680
        %2181 = vrot.lane.b32.xlu0 %v2095, 48
        %v2182 = vpop.permute.xlu0 %2181
        %2183 = vrot.lane.b32.xlu0 %v2098, 48
        %v2184 = vpop.permute.xlu0 %2183
        %2185 = vrot.lane.b32.xlu0 %v2103, 48
        %v2186 = vpop.permute.xlu0 %2185
        %2187 = vrot.lane.b32.xlu0 %v2106, 48
        %v2188 = vpop.permute.xlu0 %2187
        %2189 = vrot.lane.b32.xlu0 %v2111, 48
        %v2190 = vpop.permute.xlu0 %2189
        %2191 = vrot.lane.b32.xlu0 %v2114, 48
        %v2192 = vpop.permute.xlu0 %2191
        %2193 = vrot.lane.b32.xlu0 %v2119, 48
        %v2194 = vpop.permute.xlu0 %2193
        %2195 = vrot.lane.b32.xlu0 %v2122, 48
        %v2196 = vpop.permute.xlu0 %2195
        %v2205 = vadd.f32 %v2165, %v2182
        %v2206 = vadd.f32 %v2166, %v2184
        %v2207 = vadd.f32 %v2167, %v2186
        %v2208 = vadd.f32 %v2168, %v2188
        %v2209 = vadd.f32 %v2169, %v2190
        %v2210 = vadd.f32 %v2170, %v2192
        %v2211 = vadd.f32 %v2171, %v2194
        %v2212 = vadd.f32 %v2172, %v2196
        %vm2213 = vcmask 7168
        %v2214 = vsel %vm2213, %v773, %v1110
        %v2215 = vsel %vm2213, %v774, %v1111
        %v2216 = vsel %vm2213, %v775, %v1112
        %v2217 = vsel %vm2213, %v776, %v1113
        %v2218 = vsel %vm2213, %v777, %v1114
        %v2219 = vsel %vm2213, %v778, %v1115
        %v2220 = vsel %vm2213, %v779, %v1116
        %v2221 = vsel %vm2213, %v780, %v1117
        %vm2222 = vcmask 15360
        %v2223 = vsel %vm2222, %v2214, %v1511
        %v2224 = vsel %vm2222, %v2215, %v1512
        %v2225 = vsel %vm2222, %v2216, %v1513
        %v2226 = vsel %vm2222, %v2217, %v1514
        %v2227 = vsel %vm2222, %v2218, %v1515
        %v2228 = vsel %vm2222, %v2219, %v1516
        %v2229 = vsel %vm2222, %v2220, %v1517
        %v2230 = vsel %vm2222, %v2221, %v1518
        %vm2231 = vcmask 23552
        %v2232 = vsel %vm2231, %v2223, %v1904
        %v2233 = vsel %vm2231, %v2224, %v1905
        %v2234 = vsel %vm2231, %v2225, %v1906
        %v2235 = vsel %vm2231, %v2226, %v1907
        %v2236 = vsel %vm2231, %v2227, %v1908
        %v2237 = vsel %vm2231, %v2228, %v1909
        %v2238 = vsel %vm2231, %v2229, %v1910
        %v2239 = vsel %vm2231, %v2230, %v1911
        %vm2240 = vcmask 31744
        %2241 = vst.msk [vmem:[#allocation2] sm:$0xff] %vm2240, %v2232
        %2242 = vst.msk [vmem:[#allocation2 + $0x8] sm:$0xff] %vm2240, %v2233
        %2243 = vst.msk [vmem:[#allocation2 + $0x10] sm:$0xff] %vm2240, %v2234
        %2244 = vst.msk [vmem:[#allocation2 + $0x18] sm:$0xff] %vm2240, %v2235
        %2245 = vst.msk [vmem:[#allocation2 + $0x20] sm:$0xff] %vm2240, %v2236
        %2246 = vst.msk [vmem:[#allocation2 + $0x28] sm:$0xff] %vm2240, %v2237
        %2247 = vst.msk [vmem:[#allocation2 + $0x30] sm:$0xff] %vm2240, %v2238
        %2248 = vst.msk [vmem:[#allocation2 + $0x38] sm:$0xff] %vm2240, %v2239
        %v2249 = vsel %vm2213, %v893, %v1230
        %v2250 = vsel %vm2213, %v894, %v1231
        %v2251 = vsel %vm2213, %v895, %v1232
        %v2252 = vsel %vm2213, %v896, %v1233
        %v2253 = vsel %vm2213, %v897, %v1234
        %v2254 = vsel %vm2213, %v898, %v1235
        %v2255 = vsel %vm2213, %v899, %v1236
        %v2256 = vsel %vm2213, %v900, %v1237
        %v2257 = vsel %vm2222, %v2249, %v1631
        %v2258 = vsel %vm2222, %v2250, %v1632
        %v2259 = vsel %vm2222, %v2251, %v1633
        %v2260 = vsel %vm2222, %v2252, %v1634
        %v2261 = vsel %vm2222, %v2253, %v1635
        %v2262 = vsel %vm2222, %v2254, %v1636
        %v2263 = vsel %vm2222, %v2255, %v1637
        %v2264 = vsel %vm2222, %v2256, %v1638
        %v2265 = vsel %vm2231, %v2257, %v2024
        %v2266 = vsel %vm2231, %v2258, %v2025
        %v2267 = vsel %vm2231, %v2259, %v2026
        %v2268 = vsel %vm2231, %v2260, %v2027
        %v2269 = vsel %vm2231, %v2261, %v2028
        %v2270 = vsel %vm2231, %v2262, %v2029
        %v2271 = vsel %vm2231, %v2263, %v2030
        %v2272 = vsel %vm2231, %v2264, %v2031
        %2273 = vst.msk [vmem:[#allocation3] sm:$0xff] %vm2240, %v2265
        %2274 = vst.msk [vmem:[#allocation3 + $0x8] sm:$0xff] %vm2240, %v2266
        %2275 = vst.msk [vmem:[#allocation3 + $0x10] sm:$0xff] %vm2240, %v2267
        %2276 = vst.msk [vmem:[#allocation3 + $0x18] sm:$0xff] %vm2240, %v2268
        %2277 = vst.msk [vmem:[#allocation3 + $0x20] sm:$0xff] %vm2240, %v2269
        %2278 = vst.msk [vmem:[#allocation3 + $0x28] sm:$0xff] %vm2240, %v2270
        %2279 = vst.msk [vmem:[#allocation3 + $0x30] sm:$0xff] %vm2240, %v2271
        %2280 = vst.msk [vmem:[#allocation3 + $0x38] sm:$0xff] %vm2240, %v2272
        %p2281 = scmp.lt.s32.totalorder %s25, 1
        // Predicated region
        $region87: #{tpu_custom_call.1} parent=77 // pred_check
          %p2282 = pneg %p2281
        $region88: #{tpu_custom_call.1} parent=77 // pred_check_branch
          %2284 = sbr.rel (%p2282) target = $region90
        $region89: #{tpu_custom_call.1} parent=77 // pred_region
          %v2285 = vsel %vm484, %v1018, %v1419
          %v2286 = vsel %vm484, %v1019, %v1420
          %v2287 = vsel %vm484, %v1020, %v1421
          %v2288 = vsel %vm484, %v1021, %v1422
          %v2289 = vsel %vm484, %v1022, %v1423
          %v2290 = vsel %vm484, %v1023, %v1424
          %v2291 = vsel %vm484, %v1024, %v1425
          %v2292 = vsel %vm484, %v1025, %v1426
          %vm2293 = vcmask 261120
          %v2294 = vsel %vm2293, %v2285, %v1812
          %v2295 = vsel %vm2293, %v2286, %v1813
          %v2296 = vsel %vm2293, %v2287, %v1814
          %v2297 = vsel %vm2293, %v2288, %v1815
          %v2298 = vsel %vm2293, %v2289, %v1816
          %v2299 = vsel %vm2293, %v2290, %v1817
          %v2300 = vsel %vm2293, %v2291, %v1818
          %v2301 = vsel %vm2293, %v2292, %v1819
          %vm2302 = vcmask 392192
          %v2303 = vsel %vm2302, %v2294, %v2205
          %v2304 = vsel %vm2302, %v2295, %v2206
          %v2305 = vsel %vm2302, %v2296, %v2207
          %v2306 = vsel %vm2302, %v2297, %v2208
          %v2307 = vsel %vm2302, %v2298, %v2209
          %v2308 = vsel %vm2302, %v2299, %v2210
          %v2309 = vsel %vm2302, %v2300, %v2211
          %v2310 = vsel %vm2302, %v2301, %v2212
          %vm2311 = vcmask 523264
          %v2312 = vsel %vm2311, %v2303, %v673
          %v2313 = vsel %vm2311, %v2304, %v674
          %v2314 = vsel %vm2311, %v2305, %v675
          %v2315 = vsel %vm2311, %v2306, %v676
          %v2316 = vsel %vm2311, %v2307, %v677
          %v2317 = vsel %vm2311, %v2308, %v678
          %v2318 = vsel %vm2311, %v2309, %v679
          %v2319 = vsel %vm2311, %v2310, %v680
          %2320 = vst [vmem:[%s365] sm:$0xff] %v2312
          %2321 = vst [vmem:[%s365 + $0x8] sm:$0xff] %v2313
          %2322 = vst [vmem:[%s365 + $0x10] sm:$0xff] %v2314
          %2323 = vst [vmem:[%s365 + $0x18] sm:$0xff] %v2315
          %2324 = vst [vmem:[%s365 + $0x20] sm:$0xff] %v2316
          %2325 = vst [vmem:[%s365 + $0x28] sm:$0xff] %v2317
          %2326 = vst [vmem:[%s365 + $0x30] sm:$0xff] %v2318
          %2327 = vst [vmem:[%s365 + $0x38] sm:$0xff] %v2319
        $region90: #{tpu_custom_call.1} parent=77 // pred_fallthru
          _
        %p2328 = scmp.eq.s32.totalorder %s25, 1
        // Predicated region
        $region91: #{tpu_custom_call.1} parent=77 // pred_check
          %p2329 = pneg %p2328
        $region92: #{tpu_custom_call.1} parent=77 // pred_check_branch
          %2331 = sbr.rel (%p2329) target = $region94
        $region93: #{tpu_custom_call.1} parent=77 // pred_region
          %v2332 = vrcp.pop %v2265
          %v2333 = vrcp.pop %v2266
          %v2334 = vrcp.pop %v2267
          %v2335 = vrcp.pop %v2268
          %v2336 = vrcp.pop %v2269
          %v2337 = vrcp.pop %v2270
          %v2338 = vrcp.pop %v2271
          %v2339 = vrcp.pop %v2272
          %2341 = vset.pattern.permute.xlu0 0
          %2342 = vperm.xlu0 %2341, %v2332
          %v2343 = vpop.permute.xlu0 %2342
          %2346 = vset.pattern.permute.xlu0 0
          %2347 = vperm.xlu0 %2346, %v2333
          %v2348 = vpop.permute.xlu0 %2347
          %2351 = vset.pattern.permute.xlu0 0
          %2352 = vperm.xlu0 %2351, %v2334
          %v2353 = vpop.permute.xlu0 %2352
          %2356 = vset.pattern.permute.xlu0 0
          %2357 = vperm.xlu0 %2356, %v2335
          %v2358 = vpop.permute.xlu0 %2357
          %2361 = vset.pattern.permute.xlu0 0
          %2362 = vperm.xlu0 %2361, %v2336
          %v2363 = vpop.permute.xlu0 %2362
          %2366 = vset.pattern.permute.xlu0 0
          %2367 = vperm.xlu0 %2366, %v2337
          %v2368 = vpop.permute.xlu0 %2367
          %2371 = vset.pattern.permute.xlu0 0
          %2372 = vperm.xlu0 %2371, %v2338
          %v2373 = vpop.permute.xlu0 %2372
          %2376 = vset.pattern.permute.xlu0 0
          %2377 = vperm.xlu0 %2376, %v2339
          %v2378 = vpop.permute.xlu0 %2377
          %v2380 = vmul.f32 %v1018, %v2343
          %v2381 = vmul.f32 %v1019, %v2348
          %v2382 = vmul.f32 %v1020, %v2353
          %v2383 = vmul.f32 %v1021, %v2358
          %v2384 = vmul.f32 %v1022, %v2363
          %v2385 = vmul.f32 %v1023, %v2368
          %v2386 = vmul.f32 %v1024, %v2373
          %v2387 = vmul.f32 %v1025, %v2378
          %2388 = vset.pattern.permute.xlu0 1
          %2389 = vperm.xlu0 %2388, %v2332
          %v2390 = vpop.permute.xlu0 %2389
          %2392 = vset.pattern.permute.xlu0 1
          %2393 = vperm.xlu0 %2392, %v2333
          %v2394 = vpop.permute.xlu0 %2393
          %2396 = vset.pattern.permute.xlu0 1
          %2397 = vperm.xlu0 %2396, %v2334
          %v2398 = vpop.permute.xlu0 %2397
          %2400 = vset.pattern.permute.xlu0 1
          %2401 = vperm.xlu0 %2400, %v2335
          %v2402 = vpop.permute.xlu0 %2401
          %2404 = vset.pattern.permute.xlu0 1
          %2405 = vperm.xlu0 %2404, %v2336
          %v2406 = vpop.permute.xlu0 %2405
          %2408 = vset.pattern.permute.xlu0 1
          %2409 = vperm.xlu0 %2408, %v2337
          %v2410 = vpop.permute.xlu0 %2409
          %2412 = vset.pattern.permute.xlu0 1
          %2413 = vperm.xlu0 %2412, %v2338
          %v2414 = vpop.permute.xlu0 %2413
          %2416 = vset.pattern.permute.xlu0 1
          %2417 = vperm.xlu0 %2416, %v2339
          %v2418 = vpop.permute.xlu0 %2417
          %v2420 = vmul.f32 %v1419, %v2390
          %v2421 = vmul.f32 %v1420, %v2394
          %v2422 = vmul.f32 %v1421, %v2398
          %v2423 = vmul.f32 %v1422, %v2402
          %v2424 = vmul.f32 %v1423, %v2406
          %v2425 = vmul.f32 %v1424, %v2410
          %v2426 = vmul.f32 %v1425, %v2414
          %v2427 = vmul.f32 %v1426, %v2418
          %2428 = vset.pattern.permute.xlu0 2
          %2429 = vperm.xlu0 %2428, %v2332
          %v2430 = vpop.permute.xlu0 %2429
          %2432 = vset.pattern.permute.xlu0 2
          %2433 = vperm.xlu0 %2432, %v2333
          %v2434 = vpop.permute.xlu0 %2433
          %2436 = vset.pattern.permute.xlu0 2
          %2437 = vperm.xlu0 %2436, %v2334
          %v2438 = vpop.permute.xlu0 %2437
          %2440 = vset.pattern.permute.xlu0 2
          %2441 = vperm.xlu0 %2440, %v2335
          %v2442 = vpop.permute.xlu0 %2441
          %2444 = vset.pattern.permute.xlu0 2
          %2445 = vperm.xlu0 %2444, %v2336
          %v2446 = vpop.permute.xlu0 %2445
          %2448 = vset.pattern.permute.xlu0 2
          %2449 = vperm.xlu0 %2448, %v2337
          %v2450 = vpop.permute.xlu0 %2449
          %2452 = vset.pattern.permute.xlu0 2
          %2453 = vperm.xlu0 %2452, %v2338
          %v2454 = vpop.permute.xlu0 %2453
          %2456 = vset.pattern.permute.xlu0 2
          %2457 = vperm.xlu0 %2456, %v2339
          %v2458 = vpop.permute.xlu0 %2457
          %v2460 = vmul.f32 %v1812, %v2430
          %v2461 = vmul.f32 %v1813, %v2434
          %v2462 = vmul.f32 %v1814, %v2438
          %v2463 = vmul.f32 %v1815, %v2442
          %v2464 = vmul.f32 %v1816, %v2446
          %v2465 = vmul.f32 %v1817, %v2450
          %v2466 = vmul.f32 %v1818, %v2454
          %v2467 = vmul.f32 %v1819, %v2458
          %2468 = vset.pattern.permute.xlu0 3
          %2469 = vperm.xlu0 %2468, %v2332
          %v2470 = vpop.permute.xlu0 %2469
          %2472 = vset.pattern.permute.xlu0 3
          %2473 = vperm.xlu0 %2472, %v2333
          %v2474 = vpop.permute.xlu0 %2473
          %2476 = vset.pattern.permute.xlu0 3
          %2477 = vperm.xlu0 %2476, %v2334
          %v2478 = vpop.permute.xlu0 %2477
          %2480 = vset.pattern.permute.xlu0 3
          %2481 = vperm.xlu0 %2480, %v2335
          %v2482 = vpop.permute.xlu0 %2481
          %2484 = vset.pattern.permute.xlu0 3
          %2485 = vperm.xlu0 %2484, %v2336
          %v2486 = vpop.permute.xlu0 %2485
          %2488 = vset.pattern.permute.xlu0 3
          %2489 = vperm.xlu0 %2488, %v2337
          %v2490 = vpop.permute.xlu0 %2489
          %2492 = vset.pattern.permute.xlu0 3
          %2493 = vperm.xlu0 %2492, %v2338
          %v2494 = vpop.permute.xlu0 %2493
          %2496 = vset.pattern.permute.xlu0 3
          %2497 = vperm.xlu0 %2496, %v2339
          %v2498 = vpop.permute.xlu0 %2497
          %v2500 = vmul.f32 %v2205, %v2470
          %v2501 = vmul.f32 %v2206, %v2474
          %v2502 = vmul.f32 %v2207, %v2478
          %v2503 = vmul.f32 %v2208, %v2482
          %v2504 = vmul.f32 %v2209, %v2486
          %v2505 = vmul.f32 %v2210, %v2490
          %v2506 = vmul.f32 %v2211, %v2494
          %v2507 = vmul.f32 %v2212, %v2498
          %v2508 = vsel %vm484, %v2380, %v2420
          %v2509 = vsel %vm484, %v2381, %v2421
          %v2510 = vsel %vm484, %v2382, %v2422
          %v2511 = vsel %vm484, %v2383, %v2423
          %v2512 = vsel %vm484, %v2384, %v2424
          %v2513 = vsel %vm484, %v2385, %v2425
          %v2514 = vsel %vm484, %v2386, %v2426
          %v2515 = vsel %vm484, %v2387, %v2427
          %vm2516 = vcmask 261120
          %v2517 = vsel %vm2516, %v2508, %v2460
          %v2518 = vsel %vm2516, %v2509, %v2461
          %v2519 = vsel %vm2516, %v2510, %v2462
          %v2520 = vsel %vm2516, %v2511, %v2463
          %v2521 = vsel %vm2516, %v2512, %v2464
          %v2522 = vsel %vm2516, %v2513, %v2465
          %v2523 = vsel %vm2516, %v2514, %v2466
          %v2524 = vsel %vm2516, %v2515, %v2467
          %vm2525 = vcmask 392192
          %v2526 = vsel %vm2525, %v2517, %v2500
          %v2527 = vsel %vm2525, %v2518, %v2501
          %v2528 = vsel %vm2525, %v2519, %v2502
          %v2529 = vsel %vm2525, %v2520, %v2503
          %v2530 = vsel %vm2525, %v2521, %v2504
          %v2531 = vsel %vm2525, %v2522, %v2505
          %v2532 = vsel %vm2525, %v2523, %v2506
          %v2533 = vsel %vm2525, %v2524, %v2507
          %vm2534 = vcmask 523264
          %v2535 = vsel %vm2534, %v2526, %v673
          %v2536 = vsel %vm2534, %v2527, %v674
          %v2537 = vsel %vm2534, %v2528, %v675
          %v2538 = vsel %vm2534, %v2529, %v676
          %v2539 = vsel %vm2534, %v2530, %v677
          %v2540 = vsel %vm2534, %v2531, %v678
          %v2541 = vsel %vm2534, %v2532, %v679
          %v2542 = vsel %vm2534, %v2533, %v680
          %2543 = vst [vmem:[%s365] sm:$0xff] %v2535
          %2544 = vst [vmem:[%s365 + $0x8] sm:$0xff] %v2536
          %2545 = vst [vmem:[%s365 + $0x10] sm:$0xff] %v2537
          %2546 = vst [vmem:[%s365 + $0x18] sm:$0xff] %v2538
          %2547 = vst [vmem:[%s365 + $0x20] sm:$0xff] %v2539
          %2548 = vst [vmem:[%s365 + $0x28] sm:$0xff] %v2540
          %2549 = vst [vmem:[%s365 + $0x30] sm:$0xff] %v2541
          %2550 = vst [vmem:[%s365 + $0x38] sm:$0xff] %v2542
        $region94: #{tpu_custom_call.1} parent=77 // pred_fallthru
          _
        %s2551 = sand.u32 %s193, 1
        %s2552 = scalar_lea.sflag [#allocation6], %s2551
        %s2553 = sand.u32 %s193, 1
        %s2554 = smul.addr %s2553, 64
        %s2555 = scalar_lea.vmem [#allocation5], %s2554
        // Predicated region
        $region95: #{tpu_custom_call.1} parent=77 // pred_check
          %p2556 = pneg %p203
        $region96: #{tpu_custom_call.1} parent=77 // pred_check_branch
          %2558 = sbr.rel (%p2556) target = $region98
        $region97: #{tpu_custom_call.1} parent=77 // pred_region
          %s2559 = smul.u32 8, %s24
          %s2561 = ssub.s32 1024, 1024
          %2562 = vsyncadd %s2552, %s2561
          %s2563 = smul.addr %s2559, 128
          %s2564 = scalar_lea.hbm %s6, %s2563
          %s2565 = sshll.u32 %s2555, 4
          %s2566 = int_to_ptr.vmem [resolvable:$true] %s2565
          %2571 = dma.vmem_to_hbm [thread:$0]  %s2566, 1024, %s2564, %s2552, 128, 128, 8
        $region98: #{tpu_custom_call.1} parent=77 // pred_fallthru
          _
      $region78: #{tpu_custom_call.1} parent=5 // pred_fallthru
        _
      %p2572 = scmp.le.s32.totalorder 2, %s15
      // Predicated region
      $region99: #{tpu_custom_call.1} parent=5 // pred_check
        %p2573 = pneg %p2572
      $region100: #{tpu_custom_call.1} parent=5 // pred_check_branch
        %2575 = sbr.rel (%p2573) target = $region102
      $region101: #{tpu_custom_call.1} parent=5 // pred_region
        %s2576 = ssub.s32 %s15, 2
        // Predicated region
        $region103: #{tpu_custom_call.1} parent=101 // pred_check
          %p2577 = pneg %p209
        $region104: #{tpu_custom_call.1} parent=101 // pred_check_branch
          %2579 = sbr.rel (%p2577) target = $region106
        $region105: #{tpu_custom_call.1} parent=101 // pred_region
          %s2580 = sand.u32 %s194, 1
          %s2581 = scalar_lea.sflag [#allocation6], %s2580
          %s2582 = sand.u32 %s194, 1
          %s2583 = smul.addr %s2582, 64
          %s2584 = scalar_lea.vmem [#allocation5], %s2583
          %2585 = dma.done %s2581, 1024
        $region106: #{tpu_custom_call.1} parent=101 // pred_fallthru
          _
      $region102: #{tpu_custom_call.1} parent=5 // pred_fallthru
        _
    $region6: #{tpu_custom_call.1} parent=1 // loop_footer
      %s19 = sadd.s32 1, %s15
    $region7: #{tpu_custom_call.1} parent=1 // loop_footer_branch
      %14 = sbr.rel target = $region3
    $region8: #{tpu_custom_call.1} parent=1 // loop_exit
      _
    %2586 = vsyncpa [#allocation6], 1
    %s2587 = scalar_lea.sflag [#allocation6], 1
    %2588 = vsyncpa %s2587, 1

</llo_original>
